<compile_context>
chip_gen: v7x
topology: tpu7x:2x2x1
jax: 0.10.0
libtpu: 0.0.40
codegen_flags: <defaults>
</compile_context>

<pallas_src>
import functools
from types import SimpleNamespace

import jax
import jax.numpy as jnp
from jax import lax
from jax.experimental import pallas as pl
from jax.experimental.pallas import tpu as pltpu


def _round_up(x, m):
    return (x + m - 1) // m * m


# -------- probe: is pipeline_mode=pl.Buffered(1) supported on this JAX? ----- #

@functools.lru_cache(maxsize=1)
def _buffered_one_supported():
    try:
        def _k(x_ref, o_ref):
            o_ref[...] = x_ref[...]

        spec = pl.BlockSpec((8, 128), lambda i: (0, 0),
                            pipeline_mode=pl.Buffered(1))
        out = pl.pallas_call(
            _k,
            out_shape=jax.ShapeDtypeStruct((8, 128), jnp.float32),
            grid=(1,),
            in_specs=[spec],
            out_specs=pl.BlockSpec((8, 128), lambda i: (0, 0)),
        )(jnp.zeros((8, 128), jnp.float32))
        jax.block_until_ready(out)
        return True
    except Exception:
        return False


def _resident_spec(shape):
    """Constant-index (grid-resident) block; single-buffered when supported."""
    if _buffered_one_supported():
        return pl.BlockSpec(shape, lambda c: (0,) * len(shape),
                            pipeline_mode=pl.Buffered(1))
    return pl.BlockSpec(shape, lambda c: (0,) * len(shape))


# --------------------------- fused GRU forward ------------------------------ #

def _gru_fused_kernel(x_ref, wi_ref, gb_ref, wh_ref, bhn_ref, hw_ref, hb_ref,
                      y_ref, h_ref, g_ref, *, chunk, bp, cp, hp,
                      mask_tail, seq_len):
    c = pl.program_id(0)

    @pl.when(c == 0)
    def _():
        h_ref[...] = jnp.zeros_like(h_ref)

    # ---- per-chunk gate GEMM: one lane-dense MXU op, result stays in VMEM --
    x2d = x_ref[...].reshape(chunk * bp, cp)
    g = jnp.dot(x2d, wi_ref[...], preferred_element_type=jnp.float32)
    g_ref[...] = (g + gb_ref[...]).reshape(chunk, bp, 3 * hp)

    wh = wh_ref[...]                                     # (Hp, 3Hp) resident
    bhn_b = jnp.broadcast_to(bhn_ref[...], (bp, hp))     # hoisted broadcast

    def step(i, h):
        gi = g_ref[i]                                    # (Bp, 3Hp)
        gh = jnp.dot(h, wh, preferred_element_type=jnp.float32)  # one MXU push
        # PyTorch gate order [r, z, n]; each gate is hp lane-aligned columns.
        r = jax.nn.sigmoid(gi[:, 0 * hp:1 * hp] + gh[:, 0 * hp:1 * hp])
        z = jax.nn.sigmoid(gi[:, 1 * hp:2 * hp] + gh[:, 1 * hp:2 * hp])
        n = jnp.tanh(gi[:, 2 * hp:3 * hp] + r * (gh[:, 2 * hp:3 * hp] + bhn_b))
        h_new = (1.0 - z) * n + z * h
        if mask_tail:                    # only when T was padded up to a chunk
            t = c * chunk + i
            h_new = jnp.where(t < seq_len, h_new, h)
        return h_new

    h = lax.fori_loop(0, chunk, step, h_ref[...], unroll=True)
    h_ref[...] = h

    # Prediction head fused into the final grid step (h already in VMEM).
    @pl.when(c == pl.num_programs(0) - 1)
    def _():
        y_ref[...] = (jnp.dot(h, hw_ref[...], preferred_element_type=jnp.float32)
                      + hb_ref[...]).astype(y_ref.dtype)


def gru_forward_fused(x_tm, wi_cat, gate_bias, wh_cat, bhn, head_w, head_b,
                      *, seq_len, chunk):
    """x_tm: (Tp, Bp, Cp) time-major padded input.  Returns (Bp, Np) f32 head
    output (padded); the GRU recurrence and both GEMMs run in one kernel."""
    Tp, Bp, Cp = x_tm.shape
    H3 = wi_cat.shape[1]
    hp = H3 // 3
    Np = head_w.shape[1]
    num_chunks = Tp // chunk

    kernel = functools.partial(
        _gru_fused_kernel, chunk=chunk, bp=Bp, cp=Cp, hp=hp,
        mask_tail=(Tp != seq_len), seq_len=seq_len)

    # Explicit scoped-VMEM limit sized from actual buffers (conservatively
    # assume double-buffering everywhere) so larger CHUNK works on v5e too.
    f32b = 4
    buf_bytes = [
        chunk * Bp * Cp * f32b,                    # x chunk block
        Cp * H3 * f32b, H3 * f32b,                 # wi_cat, gate_bias
        hp * H3 * f32b, hp * f32b,                 # wh_cat, bhn
        hp * Np * f32b, Np * f32b,                 # head_w, head_b
        Bp * Np * f32b,                            # output block
        Bp * hp * f32b, chunk * Bp * H3 * f32b,    # scratches (h, gates)
    ]
    vmem_limit = int(min(max(2 * sum(buf_bytes) + (4 << 20), 32 << 20),
                         128 << 20))

    return pl.pallas_call(
        kernel,
        out_shape=jax.ShapeDtypeStruct((Bp, Np), jnp.float32),
        grid_spec=pltpu.PrefetchScalarGridSpec(
            num_scalar_prefetch=0,
            grid=(num_chunks,),
            in_specs=[
                pl.BlockSpec((chunk, Bp, Cp), lambda c: (c, 0, 0)),
                _resident_spec((Cp, H3)),
                _resident_spec((1, H3)),
                _resident_spec((hp, H3)),
                _resident_spec((1, hp)),
                _resident_spec((hp, Np)),
                _resident_spec((1, Np)),
            ],
            out_specs=pl.BlockSpec((Bp, Np), lambda c: (0, 0)),
            scratch_shapes=[pltpu.VMEM((Bp, hp), jnp.float32),
                            pltpu.VMEM((chunk, Bp, H3), jnp.float32)],
        ),
        compiler_params=pltpu.CompilerParams(
            dimension_semantics=("arbitrary",),
            vmem_limit_bytes=vmem_limit),
    )(x_tm, wi_cat, gate_bias, wh_cat, bhn, head_w, head_b)


# ------------------------------- Model glue -------------------------------- #

class GRUModelPallas:
    CHUNK = 32  # timesteps per sequential grid step

    def __init__(self, configs, key):
        self.seq_len = configs.seq_len
        self.pred_len = configs.pred_len
        self.hidden_dim = configs.hidden_dim
        self.channels = configs.enc_in
        self.individual = configs.individual
        H, C, P = self.hidden_dim, self.channels, self.pred_len

        keys = jax.random.split(key, 6)
        k = 1.0 / jnp.sqrt(jnp.float32(H))
        u = lambda kk, shape: jax.random.uniform(kk, shape, jnp.float32, -k, k)

        # nn.GRU params (single layer, batch_first); torch gate order [r, z, n]
        self.w_ih = u(keys[0], (3 * H, C))
        self.w_hh = u(keys[1], (3 * H, H))
        self.b_ih = u(keys[2], (3 * H,))
        self.b_hh = u(keys[3], (3 * H,))

        if self.individual:
            self.wl = u(keys[4], (C, P, H))   # per-channel nn.Linear(H, P)
            self.bl = u(keys[5], (C, P))
        else:
            self.wl = u(keys[4], (P, H))      # nn.Linear(H, P)
            self.bl = u(keys[5], (P,))

        # -------- one-time padded / fused weight prep (zero padding) --------
        self.Hp = _round_up(H, 128)           # hidden lanes
        self.Cp = _round_up(C, 128)           # input-channel lanes
        Hp, Cp = self.Hp, self.Cp

        wi_g = self.w_ih.reshape(3, H, C)
        wh_g = self.w_hh.reshape(3, H, H)
        bi_g = self.b_ih.reshape(3, H)
        bh_g = self.b_hh.reshape(3, H)

        def pad2(a, rows, cols):
            return jnp.pad(a, ((0, rows - a.shape[0]), (0, cols - a.shape[1])))

        def pad1(v, n):
            return jnp.pad(v, (0, n - v.shape[0]))

        # Fused input weights (Cp, 3Hp) and recurrent weights (Hp, 3Hp).
        self.wi_cat = jnp.concatenate(
            [pad2(wi_g[g].T, Cp, Hp) for g in range(3)], axis=1)
        self.wh_cat = jnp.concatenate(
            [pad2(wh_g[g].T, Hp, Hp) for g in range(3)], axis=1)

        # Biases: r/z fold b_ih+b_hh into the precomputed gates; n keeps b_ih
        # only (its b_hh term sits inside r * (h@Wh_n + b_hn)).
        self.gate_bias = jnp.concatenate([
            pad1(bi_g[0] + bh_g[0], Hp),
            pad1(bi_g[1] + bh_g[1], Hp),
            pad1(bi_g[2], Hp),
        ]).reshape(1, 3 * Hp)
        self.bhn = pad1(bh_g[2], Hp).reshape(1, Hp)

        # Prediction head collapsed to a single lane-dense GEMM (fused into
        # the recurrence kernel's last grid step).
        if self.individual:
            # W_cat[h, i*P + p] = wl[i, p, h]
            w_cat = jnp.transpose(self.wl, (2, 0, 1)).reshape(H, C * P)
            b_cat = self.bl.reshape(C * P)
        else:
            w_cat = self.wl.T                                     # (H, P)
            b_cat = self.bl
        self.Np = _round_up(w_cat.shape[1], 128)
        self.head_w = jnp.pad(w_cat, ((0, Hp - H), (0, self.Np - w_cat.shape[1])))
        self.head_b = jnp.pad(b_cat, (0, self.Np - b_cat.shape[0])).reshape(1, self.Np)

    def __call__(self, x):
        # x: (B, seq_len, channels)  (batch_first=True, matches torch)
        B, T, C = x.shape
        P = self.pred_len
        Hp, Cp = self.Hp, self.Cp
        Bp = _round_up(B, 8)      # larger effective batch is ~free throughput
        chunk = max(1, min(self.CHUNK, T))
        num_chunks = (T + chunk - 1) // chunk
        Tp = num_chunks * chunk

        # Single XLA transpose+pad into a time-major, tile-aligned slab.
        # TODO(synk): batch-major in-kernel reorder would avoid this HBM copy,
        # but requires a dynamic sublane-axis slice/transpose; kept host-side.
        x_tm = jnp.pad(jnp.transpose(x, (1, 0, 2)).astype(jnp.float32),
                       ((0, Tp - T), (0, Bp - B), (0, Cp - C)))

        # One fused kernel: per-chunk gate GEMM + serial recurrence + head.
        y = gru_forward_fused(x_tm, self.wi_cat, self.gate_bias, self.wh_cat,
                              self.bhn, self.head_w, self.head_b,
                              seq_len=T, chunk=chunk)            # (Bp, Np)

        if self.individual:
            y = y[:B, :C * P].reshape(B, C, P)
            return jnp.transpose(y, (0, 2, 1)).astype(x.dtype)   # (B, P, C)
        y = y[:B, :P]                                            # (B, P)
        # Matches torch: Linear(out[:,-1,:]).unsqueeze(1).expand(-1, pred_len, -1)
        # -> shape (B, pred_len, pred_len) (same quirk as the original module).
        return jnp.broadcast_to(y[:, None, :], (B, P, P)).astype(x.dtype)


# --------------------------- Pure-JAX reference ----------------------------- #

def reference_forward(model, x):
    B, T, C = x.shape
    H = model.hidden_dim
    h = jnp.zeros((B, H), jnp.float32)
    for t in range(T):
        gi = x[:, t].astype(jnp.float32) @ model.w_ih.T + model.b_ih
        gh = h @ model.w_hh.T + model.b_hh
        ir, iz, inn = jnp.split(gi, 3, axis=-1)
        hr, hz, hn = jnp.split(gh, 3, axis=-1)
        r = jax.nn.sigmoid(ir + hr)
        z = jax.nn.sigmoid(iz + hz)
        n = jnp.tanh(inn + r * hn)
        h = (1.0 - z) * n + z * h
    if model.individual:
        cols = [h @ model.wl[i].T + model.bl[i] for i in range(model.channels)]
        return jnp.stack(cols, axis=-1)                              # (B, P, C)
    y = h @ model.wl.T + model.bl                                    # (B, P)
    return jnp.broadcast_to(y[:, None, :], (B, model.pred_len, model.pred_len))


# ----------------------------------- Main ----------------------------------- #

if __name__ == "__main__":
    key = jax.random.PRNGKey(0)
    k_x, k_x2, k_m1, k_m2 = jax.random.split(key, 4)

    B, seq_len, enc_in, hidden_dim, pred_len = 2, 8, 4, 32, 4
    x = jax.random.normal(k_x, (B, seq_len, enc_in), jnp.float32)

    # Shared-linear head (individual=False)
    cfg = SimpleNamespace(seq_len=seq_len, pred_len=pred_len,
                          hidden_dim=hidden_dim, enc_in=enc_in, individual=False)
    model = GRUModelPallas(cfg, k_m1)
    out = jax.block_until_ready(model(x))
    ref = reference_forward(model, x)
    assert out.shape == (B, pred_len, pred_len), out.shape
    assert jnp.allclose(out, ref, rtol=1e-4, atol=1e-4)

    # Per-channel-linear head (individual=True)
    cfg_i = SimpleNamespace(seq_len=seq_len, pred_len=pred_len,
                            hidden_dim=hidden_dim, enc_in=enc_in, individual=True)
    model_i = GRUModelPallas(cfg_i, k_m2)
    out_i = jax.block_until_ready(model_i(x))
    ref_i = reference_forward(model_i, x)
    assert out_i.shape == (B, pred_len, enc_in), out_i.shape
    assert jnp.allclose(out_i, ref_i, rtol=1e-4, atol=1e-4)

    # Longer sequence exercising multiple sequential grid chunks + tail mask
    # (T=40 with CHUNK=32 -> 2 chunks, 24 masked padding steps). Slightly
    # looser tolerance: 40 recurrent steps of default-precision MXU matmuls.
    x_long = jax.random.normal(k_x2, (B, 40, enc_in), jnp.float32)
    out_l = jax.block_until_ready(model(x_long))
    ref_l = reference_forward(model, x_long)
    assert out_l.shape == (B, pred_len, pred_len), out_l.shape
    assert jnp.allclose(out_l, ref_l, rtol=5e-3, atol=5e-3)

    print("KERNEL_OK")
</pallas_src>

<mosaic_0001>
module attributes {stable_mosaic.version = 11 : i64} {
  func.func @_k(%arg0: i32, %arg1: memref<8x128xf32, #tpu.memory_space<vmem>>, %arg2: memref<8x128xf32, #tpu.memory_space<vmem>>) attributes {dimension_semantics = [#tpu.dimension_semantics<arbitrary>], iteration_bounds = array<i64: 1>, scalar_prefetch = 0 : i64, scratch_operands = 0 : i64, tpu.core_type = #tpu.core_type<tc>, window_params = [{pipeline_mode = #tpu.pipeline_mode<synchronous>, transform_indices = @transform_0, window_bounds = array<i64: 8, 128>}, {pipeline_mode = #tpu.pipeline_mode<synchronous>, transform_indices = @transform_1, window_bounds = array<i64: 8, 128>}]} {
    %c0 = arith.constant 0 : index
    %c0_0 = arith.constant 0 : index
    %0 = vector.load %arg1[%c0, %c0_0] : memref<8x128xf32, #tpu.memory_space<vmem>>, vector<8x128xf32>
    %c0_1 = arith.constant 0 : index
    %c0_2 = arith.constant 0 : index
    %1 = vector.load %arg2[%c0_1, %c0_2] : memref<8x128xf32, #tpu.memory_space<vmem>>, vector<8x128xf32>
    tpu.vector_store %arg2[%c0_1, %c0_2], %0 {strides = array<i32>} : memref<8x128xf32, #tpu.memory_space<vmem>>, vector<8x128xf32>,
    return
  }
  func.func @transform_0(%arg0: i32) -> (i32, i32) {
    %c0_i32 = arith.constant 0 : i32
    %c0_i32_0 = arith.constant 0 : i32
    %c0_i32_1 = arith.constant 0 : i32
    return %c0_i32, %c0_i32_0 : i32, i32
  }
  func.func @transform_1(%arg0: i32) -> (i32, i32) {
    %c0_i32 = arith.constant 0 : i32
    %c0_i32_0 = arith.constant 0 : i32
    %c0_i32_1 = arith.constant 0 : i32
    return %c0_i32, %c0_i32_0 : i32, i32
  }
}

module attributes {stable_mosaic.version = 11 : i64} {
  func.func @_gru_fused_kernel(%arg0: i32, %arg1: memref<8x8x128xf32, #tpu.memory_space<vmem>>, %arg2: memref<128x384xf32, #tpu.memory_space<vmem>>, %arg3: memref<1x384xf32, #tpu.memory_space<vmem>>, %arg4: memref<128x384xf32, #tpu.memory_space<vmem>>, %arg5: memref<1x128xf32, #tpu.memory_space<vmem>>, %arg6: memref<128x128xf32, #tpu.memory_space<vmem>>, %arg7: memref<1x128xf32, #tpu.memory_space<vmem>>, %arg8: memref<8x128xf32, #tpu.memory_space<vmem>>, %arg9: memref<8x128xf32, #tpu.memory_space<vmem>>, %arg10: memref<8x8x384xf32, #tpu.memory_space<vmem>>) attributes {dimension_semantics = [#tpu.dimension_semantics<arbitrary>], iteration_bounds = array<i64: 1>, scalar_prefetch = 0 : i64, scratch_operands = 2 : i64, tpu.core_type = #tpu.core_type<tc>, window_params = [{transform_indices = @transform_0, window_bounds = array<i64: 8, 8, 128>}, {pipeline_mode = #tpu.pipeline_mode<synchronous>, transform_indices = @transform_1, window_bounds = array<i64: 128, 384>}, {pipeline_mode = #tpu.pipeline_mode<synchronous>, transform_indices = @transform_2, window_bounds = array<i64: 1, 384>}, {pipeline_mode = #tpu.pipeline_mode<synchronous>, transform_indices = @transform_3, window_bounds = array<i64: 128, 384>}, {pipeline_mode = #tpu.pipeline_mode<synchronous>, transform_indices = @transform_4, window_bounds = array<i64: 1, 128>}, {pipeline_mode = #tpu.pipeline_mode<synchronous>, transform_indices = @transform_5, window_bounds = array<i64: 128, 128>}, {pipeline_mode = #tpu.pipeline_mode<synchronous>, transform_indices = @transform_6, window_bounds = array<i64: 1, 128>}, {pipeline_mode = #tpu.pipeline_mode<synchronous>, transform_indices = @transform_7, window_bounds = array<i64: 8, 128>}]} {
    %c0_i32 = arith.constant 0 : i32
    %0 = arith.cmpi eq, %arg0, %c0_i32 : i32
    %1 = arith.extui %0 : i1 to i32
    %c0_i32_0 = arith.constant 0 : i32
    %2 = arith.cmpi ne, %1, %c0_i32_0 : i32
    scf.if %2 {
      %cst_69 = arith.constant 0.000000e+00 : f32
      %269 = vector.broadcast %cst_69 : f32 to vector<8x128xf32>
      %c0_70 = arith.constant 0 : index
      %c0_71 = arith.constant 0 : index
      %270 = vector.load %arg9[%c0_70, %c0_71] : memref<8x128xf32, #tpu.memory_space<vmem>>, vector<8x128xf32>
      tpu.vector_store %arg9[%c0_70, %c0_71], %269 {strides = array<i32>} : memref<8x128xf32, #tpu.memory_space<vmem>>, vector<8x128xf32>,
    } else {
    }
    %c0 = arith.constant 0 : index
    %c0_1 = arith.constant 0 : index
    %c0_2 = arith.constant 0 : index
    %3 = vector.load %arg1[%c0, %c0_1, %c0_2] : memref<8x8x128xf32, #tpu.memory_space<vmem>>, vector<8x8x128xf32>
    %4 = vector.shape_cast %3 : vector<8x8x128xf32> to vector<64x128xf32>
    %c0_3 = arith.constant 0 : index
    %c0_4 = arith.constant 0 : index
    %5 = vector.load %arg2[%c0_3, %c0_4] : memref<128x384xf32, #tpu.memory_space<vmem>>, vector<128x384xf32>
    %cst = arith.constant dense<0.000000e+00> : vector<64x384xf32>
    %6 = tpu.matmul %4, %5, %cst {dimension_numbers = #tpu.dot_dimension_numbers<[1], [0], [0], [1], [0, 0, 1, 1], [], []>} : vector<64x128xf32>, vector<128x384xf32>, vector<64x384xf32> -> vector<64x384xf32>
    %c0_5 = arith.constant 0 : index
    %c0_6 = arith.constant 0 : index
    %7 = vector.load %arg3[%c0_5, %c0_6] : memref<1x384xf32, #tpu.memory_space<vmem>>, vector<1x384xf32>
    %8 = vector.broadcast %7 : vector<1x384xf32> to vector<64x384xf32>
    %9 = arith.addf %6, %8 : vector<64x384xf32>
    %10 = vector.shape_cast %9 : vector<64x384xf32> to vector<8x8x384xf32>
    %c0_7 = arith.constant 0 : index
    %c0_8 = arith.constant 0 : index
    %c0_9 = arith.constant 0 : index
    %11 = vector.load %arg10[%c0_7, %c0_8, %c0_9] : memref<8x8x384xf32, #tpu.memory_space<vmem>>, vector<8x8x384xf32>
    tpu.vector_store %arg10[%c0_7, %c0_8, %c0_9], %10 {strides = array<i32>} : memref<8x8x384xf32, #tpu.memory_space<vmem>>, vector<8x8x384xf32>,
    %c0_10 = arith.constant 0 : index
    %c0_11 = arith.constant 0 : index
    %12 = vector.load %arg4[%c0_10, %c0_11] : memref<128x384xf32, #tpu.memory_space<vmem>>, vector<128x384xf32>
    %c0_12 = arith.constant 0 : index
    %c0_13 = arith.constant 0 : index
    %13 = vector.load %arg5[%c0_12, %c0_13] : memref<1x128xf32, #tpu.memory_space<vmem>>, vector<1x128xf32>
    %14 = vector.shape_cast %13 : vector<1x128xf32> to vector<1x128xf32>
    %15 = vector.broadcast %14 : vector<1x128xf32> to vector<8x128xf32>
    %c0_14 = arith.constant 0 : index
    %c0_15 = arith.constant 0 : index
    %16 = vector.load %arg9[%c0_14, %c0_15] : memref<8x128xf32, #tpu.memory_space<vmem>>, vector<8x128xf32>
    %c0_i32_16 = arith.constant 0 : i32
    %17 = arith.index_cast %c0_i32_16 : i32 to index
    %c0_17 = arith.constant 0 : index
    %c0_18 = arith.constant 0 : index
    %18 = vector.load %arg10[%17, %c0_17, %c0_18] : memref<8x8x384xf32, #tpu.memory_space<vmem>>, vector<1x8x384xf32>
    %19 = vector.shape_cast %18 : vector<1x8x384xf32> to vector<8x384xf32>
    %cst_19 = arith.constant dense<0.000000e+00> : vector<8x384xf32>
    %20 = tpu.matmul %16, %12, %cst_19 {dimension_numbers = #tpu.dot_dimension_numbers<[1], [0], [0], [1], [0, 0, 1, 1], [], []>} : vector<8x128xf32>, vector<128x384xf32>, vector<8x384xf32> -> vector<8x384xf32>
    %21 = vector.extract_strided_slice %19 {offsets = [0, 0], sizes = [8, 128], strides = [1, 1]} : vector<8x384xf32> to vector<8x128xf32>
    %22 = vector.extract_strided_slice %20 {offsets = [0, 0], sizes = [8, 128], strides = [1, 1]} : vector<8x384xf32> to vector<8x128xf32>
    %23 = arith.addf %21, %22 : vector<8x128xf32>
    %24 = arith.negf %23 : vector<8x128xf32>
    %25 = math.exp %24 : vector<8x128xf32>
    %cst_20 = arith.constant 1.000000e+00 : f32
    %26 = vector.broadcast %cst_20 : f32 to vector<8x128xf32>
    %27 = arith.addf %26, %25 : vector<8x128xf32>
    %28 = arith.divf %26, %27 : vector<8x128xf32>
    %29 = vector.extract_strided_slice %19 {offsets = [0, 128], sizes = [8, 128], strides = [1, 1]} : vector<8x384xf32> to vector<8x128xf32>
    %30 = vector.extract_strided_slice %20 {offsets = [0, 128], sizes = [8, 128], strides = [1, 1]} : vector<8x384xf32> to vector<8x128xf32>
    %31 = arith.addf %29, %30 : vector<8x128xf32>
    %32 = arith.negf %31 : vector<8x128xf32>
    %33 = math.exp %32 : vector<8x128xf32>
    %cst_21 = arith.constant 1.000000e+00 : f32
    %34 = vector.broadcast %cst_21 : f32 to vector<8x128xf32>
    %35 = arith.addf %34, %33 : vector<8x128xf32>
    %36 = arith.divf %34, %35 : vector<8x128xf32>
    %37 = vector.extract_strided_slice %19 {offsets = [0, 256], sizes = [8, 128], strides = [1, 1]} : vector<8x384xf32> to vector<8x128xf32>
    %38 = vector.extract_strided_slice %20 {offsets = [0, 256], sizes = [8, 128], strides = [1, 1]} : vector<8x384xf32> to vector<8x128xf32>
    %39 = arith.addf %38, %15 : vector<8x128xf32>
    %40 = arith.mulf %28, %39 : vector<8x128xf32>
    %41 = arith.addf %37, %40 : vector<8x128xf32>
    %42 = math.tanh %41 : vector<8x128xf32>
    %cst_22 = arith.constant 1.000000e+00 : f32
    %43 = vector.broadcast %cst_22 : f32 to vector<8x128xf32>
    %44 = arith.subf %43, %36 : vector<8x128xf32>
    %45 = arith.mulf %44, %42 : vector<8x128xf32>
    %46 = arith.mulf %36, %16 : vector<8x128xf32>
    %47 = arith.addf %45, %46 : vector<8x128xf32>
    %c1_i32 = arith.constant 1 : i32
    %48 = arith.index_cast %c1_i32 : i32 to index
    %c0_23 = arith.constant 0 : index
    %c0_24 = arith.constant 0 : index
    %49 = vector.load %arg10[%48, %c0_23, %c0_24] : memref<8x8x384xf32, #tpu.memory_space<vmem>>, vector<1x8x384xf32>
    %50 = vector.shape_cast %49 : vector<1x8x384xf32> to vector<8x384xf32>
    %cst_25 = arith.constant dense<0.000000e+00> : vector<8x384xf32>
    %51 = tpu.matmul %47, %12, %cst_25 {dimension_numbers = #tpu.dot_dimension_numbers<[1], [0], [0], [1], [0, 0, 1, 1], [], []>} : vector<8x128xf32>, vector<128x384xf32>, vector<8x384xf32> -> vector<8x384xf32>
    %52 = vector.extract_strided_slice %50 {offsets = [0, 0], sizes = [8, 128], strides = [1, 1]} : vector<8x384xf32> to vector<8x128xf32>
    %53 = vector.extract_strided_slice %51 {offsets = [0, 0], sizes = [8, 128], strides = [1, 1]} : vector<8x384xf32> to vector<8x128xf32>
    %54 = arith.addf %52, %53 : vector<8x128xf32>
    %55 = arith.negf %54 : vector<8x128xf32>
    %56 = math.exp %55 : vector<8x128xf32>
    %cst_26 = arith.constant 1.000000e+00 : f32
    %57 = vector.broadcast %cst_26 : f32 to vector<8x128xf32>
    %58 = arith.addf %57, %56 : vector<8x128xf32>
    %59 = arith.divf %57, %58 : vector<8x128xf32>
    %60 = vector.extract_strided_slice %50 {offsets = [0, 128], sizes = [8, 128], strides = [1, 1]} : vector<8x384xf32> to vector<8x128xf32>
    %61 = vector.extract_strided_slice %51 {offsets = [0, 128], sizes = [8, 128], strides = [1, 1]} : vector<8x384xf32> to vector<8x128xf32>
    %62 = arith.addf %60, %61 : vector<8x128xf32>
    %63 = arith.negf %62 : vector<8x128xf32>
    %64 = math.exp %63 : vector<8x128xf32>
    %cst_27 = arith.constant 1.000000e+00 : f32
    %65 = vector.broadcast %cst_27 : f32 to vector<8x128xf32>
    %66 = arith.addf %65, %64 : vector<8x128xf32>
    %67 = arith.divf %65, %66 : vector<8x128xf32>
    %68 = vector.extract_strided_slice %50 {offsets = [0, 256], sizes = [8, 128], strides = [1, 1]} : vector<8x384xf32> to vector<8x128xf32>
    %69 = vector.extract_strided_slice %51 {offsets = [0, 256], sizes = [8, 128], strides = [1, 1]} : vector<8x384xf32> to vector<8x128xf32>
    %70 = arith.addf %69, %15 : vector<8x128xf32>
    %71 = arith.mulf %59, %70 : vector<8x128xf32>
    %72 = arith.addf %68, %71 : vector<8x128xf32>
    %73 = math.tanh %72 : vector<8x128xf32>
    %cst_28 = arith.constant 1.000000e+00 : f32
    %74 = vector.broadcast %cst_28 : f32 to vector<8x128xf32>
    %75 = arith.subf %74, %67 : vector<8x128xf32>
    %76 = arith.mulf %75, %73 : vector<8x128xf32>
    %77 = arith.mulf %67, %47 : vector<8x128xf32>
    %78 = arith.addf %76, %77 : vector<8x128xf32>
    %c2_i32 = arith.constant 2 : i32
    %79 = arith.index_cast %c2_i32 : i32 to index
    %c0_29 = arith.constant 0 : index
    %c0_30 = arith.constant 0 : index
    %80 = vector.load %arg10[%79, %c0_29, %c0_30] : memref<8x8x384xf32, #tpu.memory_space<vmem>>, vector<1x8x384xf32>
    %81 = vector.shape_cast %80 : vector<1x8x384xf32> to vector<8x384xf32>
    %cst_31 = arith.constant dense<0.000000e+00> : vector<8x384xf32>
    %82 = tpu.matmul %78, %12, %cst_31 {dimension_numbers = #tpu.dot_dimension_numbers<[1], [0], [0], [1], [0, 0, 1, 1], [], []>} : vector<8x128xf32>, vector<128x384xf32>, vector<8x384xf32> -> vector<8x384xf32>
    %83 = vector.extract_strided_slice %81 {offsets = [0, 0], sizes = [8, 128], strides = [1, 1]} : vector<8x384xf32> to vector<8x128xf32>
    %84 = vector.extract_strided_slice %82 {offsets = [0, 0], sizes = [8, 128], strides = [1, 1]} : vector<8x384xf32> to vector<8x128xf32>
    %85 = arith.addf %83, %84 : vector<8x128xf32>
    %86 = arith.negf %85 : vector<8x128xf32>
    %87 = math.exp %86 : vector<8x128xf32>
    %cst_32 = arith.constant 1.000000e+00 : f32
    %88 = vector.broadcast %cst_32 : f32 to vector<8x128xf32>
    %89 = arith.addf %88, %87 : vector<8x128xf32>
    %90 = arith.divf %88, %89 : vector<8x128xf32>
    %91 = vector.extract_strided_slice %81 {offsets = [0, 128], sizes = [8, 128], strides = [1, 1]} : vector<8x384xf32> to vector<8x128xf32>
    %92 = vector.extract_strided_slice %82 {offsets = [0, 128], sizes = [8, 128], strides = [1, 1]} : vector<8x384xf32> to vector<8x128xf32>
    %93 = arith.addf %91, %92 : vector<8x128xf32>
    %94 = arith.negf %93 : vector<8x128xf32>
    %95 = math.exp %94 : vector<8x128xf32>
    %cst_33 = arith.constant 1.000000e+00 : f32
    %96 = vector.broadcast %cst_33 : f32 to vector<8x128xf32>
    %97 = arith.addf %96, %95 : vector<8x128xf32>
    %98 = arith.divf %96, %97 : vector<8x128xf32>
    %99 = vector.extract_strided_slice %81 {offsets = [0, 256], sizes = [8, 128], strides = [1, 1]} : vector<8x384xf32> to vector<8x128xf32>
    %100 = vector.extract_strided_slice %82 {offsets = [0, 256], sizes = [8, 128], strides = [1, 1]} : vector<8x384xf32> to vector<8x128xf32>
    %101 = arith.addf %100, %15 : vector<8x128xf32>
    %102 = arith.mulf %90, %101 : vector<8x128xf32>
    %103 = arith.addf %99, %102 : vector<8x128xf32>
    %104 = math.tanh %103 : vector<8x128xf32>
    %cst_34 = arith.constant 1.000000e+00 : f32
    %105 = vector.broadcast %cst_34 : f32 to vector<8x128xf32>
    %106 = arith.subf %105, %98 : vector<8x128xf32>
    %107 = arith.mulf %106, %104 : vector<8x128xf32>
    %108 = arith.mulf %98, %78 : vector<8x128xf32>
    %109 = arith.addf %107, %108 : vector<8x128xf32>
    %c3_i32 = arith.constant 3 : i32
    %110 = arith.index_cast %c3_i32 : i32 to index
    %c0_35 = arith.constant 0 : index
    %c0_36 = arith.constant 0 : index
    %111 = vector.load %arg10[%110, %c0_35, %c0_36] : memref<8x8x384xf32, #tpu.memory_space<vmem>>, vector<1x8x384xf32>
    %112 = vector.shape_cast %111 : vector<1x8x384xf32> to vector<8x384xf32>
    %cst_37 = arith.constant dense<0.000000e+00> : vector<8x384xf32>
    %113 = tpu.matmul %109, %12, %cst_37 {dimension_numbers = #tpu.dot_dimension_numbers<[1], [0], [0], [1], [0, 0, 1, 1], [], []>} : vector<8x128xf32>, vector<128x384xf32>, vector<8x384xf32> -> vector<8x384xf32>
    %114 = vector.extract_strided_slice %112 {offsets = [0, 0], sizes = [8, 128], strides = [1, 1]} : vector<8x384xf32> to vector<8x128xf32>
    %115 = vector.extract_strided_slice %113 {offsets = [0, 0], sizes = [8, 128], strides = [1, 1]} : vector<8x384xf32> to vector<8x128xf32>
    %116 = arith.addf %114, %115 : vector<8x128xf32>
    %117 = arith.negf %116 : vector<8x128xf32>
    %118 = math.exp %117 : vector<8x128xf32>
    %cst_38 = arith.constant 1.000000e+00 : f32
    %119 = vector.broadcast %cst_38 : f32 to vector<8x128xf32>
    %120 = arith.addf %119, %118 : vector<8x128xf32>
    %121 = arith.divf %119, %120 : vector<8x128xf32>
    %122 = vector.extract_strided_slice %112 {offsets = [0, 128], sizes = [8, 128], strides = [1, 1]} : vector<8x384xf32> to vector<8x128xf32>
    %123 = vector.extract_strided_slice %113 {offsets = [0, 128], sizes = [8, 128], strides = [1, 1]} : vector<8x384xf32> to vector<8x128xf32>
    %124 = arith.addf %122, %123 : vector<8x128xf32>
    %125 = arith.negf %124 : vector<8x128xf32>
    %126 = math.exp %125 : vector<8x128xf32>
    %cst_39 = arith.constant 1.000000e+00 : f32
    %127 = vector.broadcast %cst_39 : f32 to vector<8x128xf32>
    %128 = arith.addf %127, %126 : vector<8x128xf32>
    %129 = arith.divf %127, %128 : vector<8x128xf32>
    %130 = vector.extract_strided_slice %112 {offsets = [0, 256], sizes = [8, 128], strides = [1, 1]} : vector<8x384xf32> to vector<8x128xf32>
    %131 = vector.extract_strided_slice %113 {offsets = [0, 256], sizes = [8, 128], strides = [1, 1]} : vector<8x384xf32> to vector<8x128xf32>
    %132 = arith.addf %131, %15 : vector<8x128xf32>
    %133 = arith.mulf %121, %132 : vector<8x128xf32>
    %134 = arith.addf %130, %133 : vector<8x128xf32>
    %135 = math.tanh %134 : vector<8x128xf32>
    %cst_40 = arith.constant 1.000000e+00 : f32
    %136 = vector.broadcast %cst_40 : f32 to vector<8x128xf32>
    %137 = arith.subf %136, %129 : vector<8x128xf32>
    %138 = arith.mulf %137, %135 : vector<8x128xf32>
    %139 = arith.mulf %129, %109 : vector<8x128xf32>
    %140 = arith.addf %138, %139 : vector<8x128xf32>
    %c4_i32 = arith.constant 4 : i32
    %141 = arith.index_cast %c4_i32 : i32 to index
    %c0_41 = arith.constant 0 : index
    %c0_42 = arith.constant 0 : index
    %142 = vector.load %arg10[%141, %c0_41, %c0_42] : memref<8x8x384xf32, #tpu.memory_space<vmem>>, vector<1x8x384xf32>
    %143 = vector.shape_cast %142 : vector<1x8x384xf32> to vector<8x384xf32>
    %cst_43 = arith.constant dense<0.000000e+00> : vector<8x384xf32>
    %144 = tpu.matmul %140, %12, %cst_43 {dimension_numbers = #tpu.dot_dimension_numbers<[1], [0], [0], [1], [0, 0, 1, 1], [], []>} : vector<8x128xf32>, vector<128x384xf32>, vector<8x384xf32> -> vector<8x384xf32>
    %145 = vector.extract_strided_slice %143 {offsets = [0, 0], sizes = [8, 128], strides = [1, 1]} : vector<8x384xf32> to vector<8x128xf32>
    %146 = vector.extract_strided_slice %144 {offsets = [0, 0], sizes = [8, 128], strides = [1, 1]} : vector<8x384xf32> to vector<8x128xf32>
    %147 = arith.addf %145, %146 : vector<8x128xf32>
    %148 = arith.negf %147 : vector<8x128xf32>
    %149 = math.exp %148 : vector<8x128xf32>
    %cst_44 = arith.constant 1.000000e+00 : f32
    %150 = vector.broadcast %cst_44 : f32 to vector<8x128xf32>
    %151 = arith.addf %150, %149 : vector<8x128xf32>
    %152 = arith.divf %150, %151 : vector<8x128xf32>
    %153 = vector.extract_strided_slice %143 {offsets = [0, 128], sizes = [8, 128], strides = [1, 1]} : vector<8x384xf32> to vector<8x128xf32>
    %154 = vector.extract_strided_slice %144 {offsets = [0, 128], sizes = [8, 128], strides = [1, 1]} : vector<8x384xf32> to vector<8x128xf32>
    %155 = arith.addf %153, %154 : vector<8x128xf32>
    %156 = arith.negf %155 : vector<8x128xf32>
    %157 = math.exp %156 : vector<8x128xf32>
    %cst_45 = arith.constant 1.000000e+00 : f32
    %158 = vector.broadcast %cst_45 : f32 to vector<8x128xf32>
    %159 = arith.addf %158, %157 : vector<8x128xf32>
    %160 = arith.divf %158, %159 : vector<8x128xf32>
    %161 = vector.extract_strided_slice %143 {offsets = [0, 256], sizes = [8, 128], strides = [1, 1]} : vector<8x384xf32> to vector<8x128xf32>
    %162 = vector.extract_strided_slice %144 {offsets = [0, 256], sizes = [8, 128], strides = [1, 1]} : vector<8x384xf32> to vector<8x128xf32>
    %163 = arith.addf %162, %15 : vector<8x128xf32>
    %164 = arith.mulf %152, %163 : vector<8x128xf32>
    %165 = arith.addf %161, %164 : vector<8x128xf32>
    %166 = math.tanh %165 : vector<8x128xf32>
    %cst_46 = arith.constant 1.000000e+00 : f32
    %167 = vector.broadcast %cst_46 : f32 to vector<8x128xf32>
    %168 = arith.subf %167, %160 : vector<8x128xf32>
    %169 = arith.mulf %168, %166 : vector<8x128xf32>
    %170 = arith.mulf %160, %140 : vector<8x128xf32>
    %171 = arith.addf %169, %170 : vector<8x128xf32>
    %c5_i32 = arith.constant 5 : i32
    %172 = arith.index_cast %c5_i32 : i32 to index
    %c0_47 = arith.constant 0 : index
    %c0_48 = arith.constant 0 : index
    %173 = vector.load %arg10[%172, %c0_47, %c0_48] : memref<8x8x384xf32, #tpu.memory_space<vmem>>, vector<1x8x384xf32>
    %174 = vector.shape_cast %173 : vector<1x8x384xf32> to vector<8x384xf32>
    %cst_49 = arith.constant dense<0.000000e+00> : vector<8x384xf32>
    %175 = tpu.matmul %171, %12, %cst_49 {dimension_numbers = #tpu.dot_dimension_numbers<[1], [0], [0], [1], [0, 0, 1, 1], [], []>} : vector<8x128xf32>, vector<128x384xf32>, vector<8x384xf32> -> vector<8x384xf32>
    %176 = vector.extract_strided_slice %174 {offsets = [0, 0], sizes = [8, 128], strides = [1, 1]} : vector<8x384xf32> to vector<8x128xf32>
    %177 = vector.extract_strided_slice %175 {offsets = [0, 0], sizes = [8, 128], strides = [1, 1]} : vector<8x384xf32> to vector<8x128xf32>
    %178 = arith.addf %176, %177 : vector<8x128xf32>
    %179 = arith.negf %178 : vector<8x128xf32>
    %180 = math.exp %179 : vector<8x128xf32>
    %cst_50 = arith.constant 1.000000e+00 : f32
    %181 = vector.broadcast %cst_50 : f32 to vector<8x128xf32>
    %182 = arith.addf %181, %180 : vector<8x128xf32>
    %183 = arith.divf %181, %182 : vector<8x128xf32>
    %184 = vector.extract_strided_slice %174 {offsets = [0, 128], sizes = [8, 128], strides = [1, 1]} : vector<8x384xf32> to vector<8x128xf32>
    %185 = vector.extract_strided_slice %175 {offsets = [0, 128], sizes = [8, 128], strides = [1, 1]} : vector<8x384xf32> to vector<8x128xf32>
    %186 = arith.addf %184, %185 : vector<8x128xf32>
    %187 = arith.negf %186 : vector<8x128xf32>
    %188 = math.exp %187 : vector<8x128xf32>
    %cst_51 = arith.constant 1.000000e+00 : f32
    %189 = vector.broadcast %cst_51 : f32 to vector<8x128xf32>
    %190 = arith.addf %189, %188 : vector<8x128xf32>
    %191 = arith.divf %189, %190 : vector<8x128xf32>
    %192 = vector.extract_strided_slice %174 {offsets = [0, 256], sizes = [8, 128], strides = [1, 1]} : vector<8x384xf32> to vector<8x128xf32>
    %193 = vector.extract_strided_slice %175 {offsets = [0, 256], sizes = [8, 128], strides = [1, 1]} : vector<8x384xf32> to vector<8x128xf32>
    %194 = arith.addf %193, %15 : vector<8x128xf32>
    %195 = arith.mulf %183, %194 : vector<8x128xf32>
    %196 = arith.addf %192, %195 : vector<8x128xf32>
    %197 = math.tanh %196 : vector<8x128xf32>
    %cst_52 = arith.constant 1.000000e+00 : f32
    %198 = vector.broadcast %cst_52 : f32 to vector<8x128xf32>
    %199 = arith.subf %198, %191 : vector<8x128xf32>
    %200 = arith.mulf %199, %197 : vector<8x128xf32>
    %201 = arith.mulf %191, %171 : vector<8x128xf32>
    %202 = arith.addf %200, %201 : vector<8x128xf32>
    %c6_i32 = arith.constant 6 : i32
    %203 = arith.index_cast %c6_i32 : i32 to index
    %c0_53 = arith.constant 0 : index
    %c0_54 = arith.constant 0 : index
    %204 = vector.load %arg10[%203, %c0_53, %c0_54] : memref<8x8x384xf32, #tpu.memory_space<vmem>>, vector<1x8x384xf32>
    %205 = vector.shape_cast %204 : vector<1x8x384xf32> to vector<8x384xf32>
    %cst_55 = arith.constant dense<0.000000e+00> : vector<8x384xf32>
    %206 = tpu.matmul %202, %12, %cst_55 {dimension_numbers = #tpu.dot_dimension_numbers<[1], [0], [0], [1], [0, 0, 1, 1], [], []>} : vector<8x128xf32>, vector<128x384xf32>, vector<8x384xf32> -> vector<8x384xf32>
    %207 = vector.extract_strided_slice %205 {offsets = [0, 0], sizes = [8, 128], strides = [1, 1]} : vector<8x384xf32> to vector<8x128xf32>
    %208 = vector.extract_strided_slice %206 {offsets = [0, 0], sizes = [8, 128], strides = [1, 1]} : vector<8x384xf32> to vector<8x128xf32>
    %209 = arith.addf %207, %208 : vector<8x128xf32>
    %210 = arith.negf %209 : vector<8x128xf32>
    %211 = math.exp %210 : vector<8x128xf32>
    %cst_56 = arith.constant 1.000000e+00 : f32
    %212 = vector.broadcast %cst_56 : f32 to vector<8x128xf32>
    %213 = arith.addf %212, %211 : vector<8x128xf32>
    %214 = arith.divf %212, %213 : vector<8x128xf32>
    %215 = vector.extract_strided_slice %205 {offsets = [0, 128], sizes = [8, 128], strides = [1, 1]} : vector<8x384xf32> to vector<8x128xf32>
    %216 = vector.extract_strided_slice %206 {offsets = [0, 128], sizes = [8, 128], strides = [1, 1]} : vector<8x384xf32> to vector<8x128xf32>
    %217 = arith.addf %215, %216 : vector<8x128xf32>
    %218 = arith.negf %217 : vector<8x128xf32>
    %219 = math.exp %218 : vector<8x128xf32>
    %cst_57 = arith.constant 1.000000e+00 : f32
    %220 = vector.broadcast %cst_57 : f32 to vector<8x128xf32>
    %221 = arith.addf %220, %219 : vector<8x128xf32>
    %222 = arith.divf %220, %221 : vector<8x128xf32>
    %223 = vector.extract_strided_slice %205 {offsets = [0, 256], sizes = [8, 128], strides = [1, 1]} : vector<8x384xf32> to vector<8x128xf32>
    %224 = vector.extract_strided_slice %206 {offsets = [0, 256], sizes = [8, 128], strides = [1, 1]} : vector<8x384xf32> to vector<8x128xf32>
    %225 = arith.addf %224, %15 : vector<8x128xf32>
    %226 = arith.mulf %214, %225 : vector<8x128xf32>
    %227 = arith.addf %223, %226 : vector<8x128xf32>
    %228 = math.tanh %227 : vector<8x128xf32>
    %cst_58 = arith.constant 1.000000e+00 : f32
    %229 = vector.broadcast %cst_58 : f32 to vector<8x128xf32>
    %230 = arith.subf %229, %222 : vector<8x128xf32>
    %231 = arith.mulf %230, %228 : vector<8x128xf32>
    %232 = arith.mulf %222, %202 : vector<8x128xf32>
    %233 = arith.addf %231, %232 : vector<8x128xf32>
    %c7_i32 = arith.constant 7 : i32
    %234 = arith.index_cast %c7_i32 : i32 to index
    %c0_59 = arith.constant 0 : index
    %c0_60 = arith.constant 0 : index
    %235 = vector.load %arg10[%234, %c0_59, %c0_60] : memref<8x8x384xf32, #tpu.memory_space<vmem>>, vector<1x8x384xf32>
    %236 = vector.shape_cast %235 : vector<1x8x384xf32> to vector<8x384xf32>
    %cst_61 = arith.constant dense<0.000000e+00> : vector<8x384xf32>
    %237 = tpu.matmul %233, %12, %cst_61 {dimension_numbers = #tpu.dot_dimension_numbers<[1], [0], [0], [1], [0, 0, 1, 1], [], []>} : vector<8x128xf32>, vector<128x384xf32>, vector<8x384xf32> -> vector<8x384xf32>
    %238 = vector.extract_strided_slice %236 {offsets = [0, 0], sizes = [8, 128], strides = [1, 1]} : vector<8x384xf32> to vector<8x128xf32>
    %239 = vector.extract_strided_slice %237 {offsets = [0, 0], sizes = [8, 128], strides = [1, 1]} : vector<8x384xf32> to vector<8x128xf32>
    %240 = arith.addf %238, %239 : vector<8x128xf32>
    %241 = arith.negf %240 : vector<8x128xf32>
    %242 = math.exp %241 : vector<8x128xf32>
    %cst_62 = arith.constant 1.000000e+00 : f32
    %243 = vector.broadcast %cst_62 : f32 to vector<8x128xf32>
    %244 = arith.addf %243, %242 : vector<8x128xf32>
    %245 = arith.divf %243, %244 : vector<8x128xf32>
    %246 = vector.extract_strided_slice %236 {offsets = [0, 128], sizes = [8, 128], strides = [1, 1]} : vector<8x384xf32> to vector<8x128xf32>
    %247 = vector.extract_strided_slice %237 {offsets = [0, 128], sizes = [8, 128], strides = [1, 1]} : vector<8x384xf32> to vector<8x128xf32>
    %248 = arith.addf %246, %247 : vector<8x128xf32>
    %249 = arith.negf %248 : vector<8x128xf32>
    %250 = math.exp %249 : vector<8x128xf32>
    %cst_63 = arith.constant 1.000000e+00 : f32
    %251 = vector.broadcast %cst_63 : f32 to vector<8x128xf32>
    %252 = arith.addf %251, %250 : vector<8x128xf32>
    %253 = arith.divf %251, %252 : vector<8x128xf32>
    %254 = vector.extract_strided_slice %236 {offsets = [0, 256], sizes = [8, 128], strides = [1, 1]} : vector<8x384xf32> to vector<8x128xf32>
    %255 = vector.extract_strided_slice %237 {offsets = [0, 256], sizes = [8, 128], strides = [1, 1]} : vector<8x384xf32> to vector<8x128xf32>
    %256 = arith.addf %255, %15 : vector<8x128xf32>
    %257 = arith.mulf %245, %256 : vector<8x128xf32>
    %258 = arith.addf %254, %257 : vector<8x128xf32>
    %259 = math.tanh %258 : vector<8x128xf32>
    %cst_64 = arith.constant 1.000000e+00 : f32
    %260 = vector.broadcast %cst_64 : f32 to vector<8x128xf32>
    %261 = arith.subf %260, %253 : vector<8x128xf32>
    %262 = arith.mulf %261, %259 : vector<8x128xf32>
    %263 = arith.mulf %253, %233 : vector<8x128xf32>
    %264 = arith.addf %262, %263 : vector<8x128xf32>
    %c8_i32 = arith.constant 8 : i32
    %c0_65 = arith.constant 0 : index
    %c0_66 = arith.constant 0 : index
    %265 = vector.load %arg9[%c0_65, %c0_66] : memref<8x128xf32, #tpu.memory_space<vmem>>, vector<8x128xf32>
    tpu.vector_store %arg9[%c0_65, %c0_66], %264 {strides = array<i32>} : memref<8x128xf32, #tpu.memory_space<vmem>>, vector<8x128xf32>,
    %c0_i32_67 = arith.constant 0 : i32
    %266 = arith.cmpi eq, %arg0, %c0_i32_67 : i32
    %267 = arith.extui %266 : i1 to i32
    %c0_i32_68 = arith.constant 0 : i32
    %268 = arith.cmpi ne, %267, %c0_i32_68 : i32
    scf.if %268 {
      %c0_69 = arith.constant 0 : index
      %c0_70 = arith.constant 0 : index
      %269 = vector.load %arg6[%c0_69, %c0_70] : memref<128x128xf32, #tpu.memory_space<vmem>>, vector<128x128xf32>
      %cst_71 = arith.constant dense<0.000000e+00> : vector<8x128xf32>
      %270 = tpu.matmul %264, %269, %cst_71 {dimension_numbers = #tpu.dot_dimension_numbers<[1], [0], [0], [1], [0, 0, 1, 1], [], []>} : vector<8x128xf32>, vector<128x128xf32>, vector<8x128xf32> -> vector<8x128xf32>
      %c0_72 = arith.constant 0 : index
      %c0_73 = arith.constant 0 : index
      %271 = vector.load %arg7[%c0_72, %c0_73] : memref<1x128xf32, #tpu.memory_space<vmem>>, vector<1x128xf32>
      %272 = vector.broadcast %271 : vector<1x128xf32> to vector<8x128xf32>
      %273 = arith.addf %270, %272 : vector<8x128xf32>
      %c0_74 = arith.constant 0 : index
      %c0_75 = arith.constant 0 : index
      %274 = vector.load %arg8[%c0_74, %c0_75] : memref<8x128xf32, #tpu.memory_space<vmem>>, vector<8x128xf32>
      tpu.vector_store %arg8[%c0_74, %c0_75], %273 {strides = array<i32>} : memref<8x128xf32, #tpu.memory_space<vmem>>, vector<8x128xf32>,
    } else {
    }
    return
  }
  func.func @transform_0(%arg0: i32) -> (i32, i32, i32) {
    %c0_i32 = arith.constant 0 : i32
    %c0_i32_0 = arith.constant 0 : i32
    %c0_i32_1 = arith.constant 0 : i32
    return %arg0, %c0_i32, %c0_i32_0 : i32, i32, i32
  }
  func.func @transform_1(%arg0: i32) -> (i32, i32) {
    %c0_i32 = arith.constant 0 : i32
    %c0_i32_0 = arith.constant 0 : i32
    %c0_i32_1 = arith.constant 0 : i32
    return %c0_i32, %c0_i32_0 : i32, i32
  }
  func.func @transform_2(%arg0: i32) -> (i32, i32) {
    %c0_i32 = arith.constant 0 : i32
    %c0_i32_0 = arith.constant 0 : i32
    %c0_i32_1 = arith.constant 0 : i32
    return %c0_i32, %c0_i32_0 : i32, i32
  }
  func.func @transform_3(%arg0: i32) -> (i32, i32) {
    %c0_i32 = arith.constant 0 : i32
    %c0_i32_0 = arith.constant 0 : i32
    %c0_i32_1 = arith.constant 0 : i32
    return %c0_i32, %c0_i32_0 : i32, i32
  }
  func.func @transform_4(%arg0: i32) -> (i32, i32) {
    %c0_i32 = arith.constant 0 : i32
    %c0_i32_0 = arith.constant 0 : i32
    %c0_i32_1 = arith.constant 0 : i32
    return %c0_i32, %c0_i32_0 : i32, i32
  }
  func.func @transform_5(%arg0: i32) -> (i32, i32) {
    %c0_i32 = arith.constant 0 : i32
    %c0_i32_0 = arith.constant 0 : i32
    %c0_i32_1 = arith.constant 0 : i32
    return %c0_i32, %c0_i32_0 : i32, i32
  }
  func.func @transform_6(%arg0: i32) -> (i32, i32) {
    %c0_i32 = arith.constant 0 : i32
    %c0_i32_0 = arith.constant 0 : i32
    %c0_i32_1 = arith.constant 0 : i32
    return %c0_i32, %c0_i32_0 : i32, i32
  }
  func.func @transform_7(%arg0: i32) -> (i32, i32) {
    %c0_i32 = arith.constant 0 : i32
    %c0_i32_0 = arith.constant 0 : i32
    %c0_i32_1 = arith.constant 0 : i32
    return %c0_i32, %c0_i32_0 : i32, i32
  }
}

</mosaic_0001>

<llo_original>
// kernel: tpu_custom_call.1
$region0: #{tpu_custom_call.1}
  #allocation0 [shape = 'u32[]', space=smem, size = 0x4, offset = 0x4, fixed_abs, tag = 'smem constant byte address 0x4 - core index']
  #allocation1 [shape = 'u32[144,128]{1,0:T(1,128)}', space=vmem, size = 0x12000, scoped, tag = 'internal scratch']
  %s0 = inlined_call_operand.hbm [shape: f32[8,128], index: 0, kind: input, shape index: {}]
  %s1 = inlined_call_operand.hbm [shape: f32[8,128], index: 1, kind: output, shape index: {}]
  %s2 = sld [smem:[#allocation0]]
  $region18: #{tpu_custom_call.1} parent=0
    _
  %s4 = ssub.s32 1, %s2
  %s5 = scalar_select 0, %s4, %s2
  $region1: #{tpu_custom_call.1} parent=0
    #allocation2 [shape = 'u8[4096]{0}', space=vmem, size = 0x1000, scoped, tag = 'input window, operand 0, single buffered']
    #allocation3 [shape = 's32[1]{0}', space=sflag, size = 0x4, scoped, tag = 'scoped memory for tpu_custom_call.1']
    #allocation4 [shape = 's32[1]{0}', space=sflag, size = 0x4, scoped, tag = 'scoped memory for tpu_custom_call.1']
    #allocation5 [shape = 'u8[4096]{0}', space=vmem, size = 0x1000, scoped, tag = 'output window, operand 0, single buffered']
    %6 = vsyncpa [#allocation3], 0
    %7 = vsyncpa [#allocation4], 0
    // Predicated region
    $region2: #{tpu_custom_call.1} parent=1 // pred_check
      _
    $region3: #{tpu_custom_call.1} parent=1 // pred_check_branch
      %9 = sbr.rel (0) target = $region5
    $region4: #{tpu_custom_call.1} parent=1 // pred_region
      %s11 = ssub.s32 128, 128
      %12 = vsyncadd [#allocation3], %s11
      %s14 = sshll.u32 [#allocation2], 4
      %s15 = int_to_ptr.vmem [resolvable:$true] %s14
      %17 = dma.hbm_to_vmem [thread:$0]  %s0, 128, %s15, [#allocation3]
    $region5: #{tpu_custom_call.1} parent=1 // pred_fallthru
      _
    // Predicated region
    $region6: #{tpu_custom_call.1} parent=1 // pred_check
      _
    $region7: #{tpu_custom_call.1} parent=1 // pred_check_branch
      %19 = sbr.rel (0) target = $region9
    $region8: #{tpu_custom_call.1} parent=1 // pred_region
      %20 = dma.done [#allocation3], 128
    $region9: #{tpu_custom_call.1} parent=1 // pred_fallthru
      _
    %v21 = vld [vmem:[#allocation2] sm:$0xff]
    %22 = vst [vmem:[#allocation5] sm:$0xff] %v21
    // Predicated region
    $region10: #{tpu_custom_call.1} parent=1 // pred_check
      _
    $region11: #{tpu_custom_call.1} parent=1 // pred_check_branch
      %24 = sbr.rel (0) target = $region13
    $region12: #{tpu_custom_call.1} parent=1 // pred_region
      %s26 = ssub.s32 128, 128
      %27 = vsyncadd [#allocation4], %s26
      %s29 = sshll.u32 [#allocation5], 4
      %s30 = int_to_ptr.vmem [resolvable:$true] %s29
      %32 = dma.vmem_to_hbm [thread:$0]  %s30, 128, %s1, [#allocation4]
    $region13: #{tpu_custom_call.1} parent=1 // pred_fallthru
      _
    // Predicated region
    $region14: #{tpu_custom_call.1} parent=1 // pred_check
      _
    $region15: #{tpu_custom_call.1} parent=1 // pred_check_branch
      %34 = sbr.rel (0) target = $region17
    $region16: #{tpu_custom_call.1} parent=1 // pred_region
      %35 = dma.done [#allocation4], 128
    $region17: #{tpu_custom_call.1} parent=1 // pred_fallthru
      _
    %36 = vsyncpa [#allocation3], 1
    %37 = vsyncpa [#allocation4], 1

// kernel: tpu_custom_call.1
$region0: #{tpu_custom_call.1}
  #allocation0 [shape = 'u32[]', space=smem, size = 0x4, offset = 0x4, fixed_abs, tag = 'smem constant byte address 0x4 - core index']
  #allocation1 [shape = 'u32[144,128]{1,0:T(1,128)}', space=vmem, size = 0x12000, scoped, tag = 'internal scratch']
  #allocation2 [shape = 'f32[8,128]{1,0:T(8,128)}', space=vmem, size = 0x1000, scoped, tag = 'scratch operand']
  #allocation3 [shape = 'f32[8,8,384]{2,1,0:T(8,128)}', space=vmem, size = 0x18000, scoped, tag = 'scratch operand']
  %s0 = inlined_call_operand.hbm [shape: f32[8,8,128], index: 0, kind: input, shape index: {}]
  %s1 = inlined_call_operand.hbm [shape: f32[128,384], index: 1, kind: input, shape index: {}]
  %s2 = inlined_call_operand.vmem [shape: f32[1,384], index: 2, kind: input, shape index: {}]
  %s3 = inlined_call_operand.hbm [shape: f32[128,384], index: 3, kind: input, shape index: {}]
  %s4 = inlined_call_operand.vmem [shape: f32[1,128], index: 4, kind: input, shape index: {}]
  %s5 = inlined_call_operand.hbm [shape: f32[128,128], index: 5, kind: input, shape index: {}]
  %s6 = inlined_call_operand.vmem [shape: f32[1,128], index: 6, kind: input, shape index: {}]
  %s7 = inlined_call_operand.hbm [shape: f32[8,128], index: 7, kind: output, shape index: {}]
  %s8 = sld [smem:[#allocation0]]
  $region62: #{tpu_custom_call.1} parent=0
    _
  %s10 = ssub.s32 1, %s8
  %s11 = scalar_select 0, %s10, %s8
  $region1: #{tpu_custom_call.1} parent=0
    #allocation4 [shape = 'u8[32768]{0}', space=vmem, size = 0x8000, scoped, tag = 'input window, operand 0, single buffered']
    #allocation5 [shape = 's32[1]{0}', space=sflag, size = 0x4, scoped, tag = 'scoped memory for tpu_custom_call.1']
    #allocation6 [shape = 's32[1]{0}', space=sflag, size = 0x4, scoped, tag = 'scoped memory for tpu_custom_call.1']
    #allocation7 [shape = 'u8[196608]{0}', space=vmem, size = 0x30000, scoped, tag = 'input window, operand 1, single buffered']
    #allocation8 [shape = 's32[1]{0}', space=sflag, size = 0x4, scoped, tag = 'scoped memory for tpu_custom_call.1']
    #allocation9 [shape = 'u8[196608]{0}', space=vmem, size = 0x30000, scoped, tag = 'input window, operand 3, single buffered']
    #allocation10 [shape = 'u8[65536]{0}', space=vmem, size = 0x10000, scoped, tag = 'input window, operand 5, single buffered']
    #allocation11 [shape = 's32[1]{0}', space=sflag, size = 0x4, scoped, tag = 'scoped memory for tpu_custom_call.1']
    #allocation12 [shape = 'u8[4096]{0}', space=vmem, size = 0x1000, scoped, tag = 'output window, operand 0, single buffered']
    %12 = vsyncpa [#allocation5], 0
    %13 = vsyncpa [#allocation8], 0
    %14 = vsyncpa [#allocation11], 0
    %15 = vsyncpa [#allocation6], 0
    // Predicated region
    $region2: #{tpu_custom_call.1} parent=1 // pred_check
      _
    $region3: #{tpu_custom_call.1} parent=1 // pred_check_branch
      %17 = sbr.rel (0) target = $region5
    $region4: #{tpu_custom_call.1} parent=1 // pred_region
      %s19 = ssub.s32 1024, 1024
      %20 = vsyncadd [#allocation5], %s19
      %s21 = sshll.u32 [#allocation4], 4
      %s22 = int_to_ptr.vmem [resolvable:$true] %s21
      %27 = dma.hbm_to_vmem [thread:$0]  %s0, 1024, %s22, [#allocation5], 128, 128, 8
    $region5: #{tpu_custom_call.1} parent=1 // pred_fallthru
      _
    // Predicated region
    $region6: #{tpu_custom_call.1} parent=1 // pred_check
      _
    $region7: #{tpu_custom_call.1} parent=1 // pred_check_branch
      %29 = sbr.rel (0) target = $region9
    $region8: #{tpu_custom_call.1} parent=1 // pred_region
      %s31 = ssub.s32 6144, 6144
      %32 = vsyncadd [#allocation8], %s31
      %s33 = sshll.u32 [#allocation7], 4
      %s34 = int_to_ptr.vmem [resolvable:$true] %s33
      %39 = dma.hbm_to_vmem [thread:$0]  %s1, 6144, %s34, [#allocation8], 384, 384, 24
    $region9: #{tpu_custom_call.1} parent=1 // pred_fallthru
      _
    // Predicated region
    $region10: #{tpu_custom_call.1} parent=1 // pred_check
      _
    $region11: #{tpu_custom_call.1} parent=1 // pred_check_branch
      %41 = sbr.rel (0) target = $region13
    $region12: #{tpu_custom_call.1} parent=1 // pred_region
      _
    $region13: #{tpu_custom_call.1} parent=1 // pred_fallthru
      _
    // Predicated region
    $region14: #{tpu_custom_call.1} parent=1 // pred_check
      _
    $region15: #{tpu_custom_call.1} parent=1 // pred_check_branch
      %43 = sbr.rel (0) target = $region17
    $region16: #{tpu_custom_call.1} parent=1 // pred_region
      %s45 = ssub.s32 6144, 6144
      %46 = vsyncadd [#allocation8], %s45
      %s47 = sshll.u32 [#allocation9], 4
      %s48 = int_to_ptr.vmem [resolvable:$true] %s47
      %53 = dma.hbm_to_vmem [thread:$0]  %s3, 6144, %s48, [#allocation8], 384, 384, 24
    $region17: #{tpu_custom_call.1} parent=1 // pred_fallthru
      _
    // Predicated region
    $region18: #{tpu_custom_call.1} parent=1 // pred_check
      _
    $region19: #{tpu_custom_call.1} parent=1 // pred_check_branch
      %55 = sbr.rel (0) target = $region21
    $region20: #{tpu_custom_call.1} parent=1 // pred_region
      _
    $region21: #{tpu_custom_call.1} parent=1 // pred_fallthru
      _
    // Predicated region
    $region22: #{tpu_custom_call.1} parent=1 // pred_check
      _
    $region23: #{tpu_custom_call.1} parent=1 // pred_check_branch
      %57 = sbr.rel (0) target = $region25
    $region24: #{tpu_custom_call.1} parent=1 // pred_region
      %s59 = ssub.s32 2048, 2048
      %60 = vsyncadd [#allocation11], %s59
      %s61 = sshll.u32 [#allocation10], 4
      %s62 = int_to_ptr.vmem [resolvable:$true] %s61
      %67 = dma.hbm_to_vmem [thread:$0]  %s5, 2048, %s62, [#allocation11], 128, 128, 8
    $region25: #{tpu_custom_call.1} parent=1 // pred_fallthru
      _
    // Predicated region
    $region26: #{tpu_custom_call.1} parent=1 // pred_check
      _
    $region27: #{tpu_custom_call.1} parent=1 // pred_check_branch
      %69 = sbr.rel (0) target = $region29
    $region28: #{tpu_custom_call.1} parent=1 // pred_region
      _
    $region29: #{tpu_custom_call.1} parent=1 // pred_fallthru
      _
    // Predicated region
    $region30: #{tpu_custom_call.1} parent=1 // pred_check
      _
    $region31: #{tpu_custom_call.1} parent=1 // pred_check_branch
      %71 = sbr.rel (0) target = $region33
    $region32: #{tpu_custom_call.1} parent=1 // pred_region
      %72 = dma.done [#allocation5], 1024
    $region33: #{tpu_custom_call.1} parent=1 // pred_fallthru
      _
    // Predicated region
    $region34: #{tpu_custom_call.1} parent=1 // pred_check
      _
    $region35: #{tpu_custom_call.1} parent=1 // pred_check_branch
      %74 = sbr.rel (0) target = $region37
    $region36: #{tpu_custom_call.1} parent=1 // pred_region
      %75 = dma.done [#allocation8], 6144
    $region37: #{tpu_custom_call.1} parent=1 // pred_fallthru
      _
    // Predicated region
    $region38: #{tpu_custom_call.1} parent=1 // pred_check
      _
    $region39: #{tpu_custom_call.1} parent=1 // pred_check_branch
      %77 = sbr.rel (0) target = $region41
    $region40: #{tpu_custom_call.1} parent=1 // pred_region
      %78 = dma.done [#allocation8], 6144
    $region41: #{tpu_custom_call.1} parent=1 // pred_fallthru
      _
    // Predicated region
    $region42: #{tpu_custom_call.1} parent=1 // pred_check
      _
    $region43: #{tpu_custom_call.1} parent=1 // pred_check_branch
      %80 = sbr.rel (0) target = $region45
    $region44: #{tpu_custom_call.1} parent=1 // pred_region
      %81 = dma.done [#allocation11], 2048
    $region45: #{tpu_custom_call.1} parent=1 // pred_fallthru
      _
    %p82 = scmp.eq.s32.totalorder 0, 0
    // Predicated region
    $region46: #{tpu_custom_call.1} parent=1 // pred_check
      %p83 = pneg %p82
    $region47: #{tpu_custom_call.1} parent=1 // pred_check_branch
      %85 = sbr.rel (%p83) target = $region49
    $region48: #{tpu_custom_call.1} parent=1 // pred_region
      %86 = vst [vmem:[#allocation2] sm:$0xff] 0.0
    $region49: #{tpu_custom_call.1} parent=1 // pred_fallthru
      _
    %v87 = vld [vmem:[#allocation4] sm:$0xff]
    %v88 = vld [vmem:[#allocation4 + $0x8] sm:$0xff]
    %v89 = vld [vmem:[#allocation4 + $0x10] sm:$0xff]
    %v90 = vld [vmem:[#allocation4 + $0x18] sm:$0xff]
    %v91 = vld [vmem:[#allocation4 + $0x20] sm:$0xff]
    %v92 = vld [vmem:[#allocation4 + $0x28] sm:$0xff]
    %v93 = vld [vmem:[#allocation4 + $0x30] sm:$0xff]
    %v94 = vld [vmem:[#allocation4 + $0x38] sm:$0xff]
    %v95 = vld [vmem:[#allocation7] sm:$0xff]
    %v96 = vld [vmem:[#allocation7 + $0x8] sm:$0xff]
    %v97 = vld [vmem:[#allocation7 + $0x10] sm:$0xff]
    %v98 = vld [vmem:[#allocation7 + $0x18] sm:$0xff]
    %v99 = vld [vmem:[#allocation7 + $0x20] sm:$0xff]
    %v100 = vld [vmem:[#allocation7 + $0x28] sm:$0xff]
    %v101 = vld [vmem:[#allocation7 + $0x30] sm:$0xff]
    %v102 = vld [vmem:[#allocation7 + $0x38] sm:$0xff]
    %v103 = vld [vmem:[#allocation7 + $0x40] sm:$0xff]
    %v104 = vld [vmem:[#allocation7 + $0x48] sm:$0xff]
    %v105 = vld [vmem:[#allocation7 + $0x50] sm:$0xff]
    %v106 = vld [vmem:[#allocation7 + $0x58] sm:$0xff]
    %v107 = vld [vmem:[#allocation7 + $0x60] sm:$0xff]
    %v108 = vld [vmem:[#allocation7 + $0x68] sm:$0xff]
    %v109 = vld [vmem:[#allocation7 + $0x70] sm:$0xff]
    %v110 = vld [vmem:[#allocation7 + $0x78] sm:$0xff]
    %v111 = vld [vmem:[#allocation7 + $0x80] sm:$0xff]
    %v112 = vld [vmem:[#allocation7 + $0x88] sm:$0xff]
    %v113 = vld [vmem:[#allocation7 + $0x90] sm:$0xff]
    %v114 = vld [vmem:[#allocation7 + $0x98] sm:$0xff]
    %v115 = vld [vmem:[#allocation7 + $0xa0] sm:$0xff]
    %v116 = vld [vmem:[#allocation7 + $0xa8] sm:$0xff]
    %v117 = vld [vmem:[#allocation7 + $0xb0] sm:$0xff]
    %v118 = vld [vmem:[#allocation7 + $0xb8] sm:$0xff]
    %v119 = vld [vmem:[#allocation7 + $0xc0] sm:$0xff]
    %v120 = vld [vmem:[#allocation7 + $0xc8] sm:$0xff]
    %v121 = vld [vmem:[#allocation7 + $0xd0] sm:$0xff]
    %v122 = vld [vmem:[#allocation7 + $0xd8] sm:$0xff]
    %v123 = vld [vmem:[#allocation7 + $0xe0] sm:$0xff]
    %v124 = vld [vmem:[#allocation7 + $0xe8] sm:$0xff]
    %v125 = vld [vmem:[#allocation7 + $0xf0] sm:$0xff]
    %v126 = vld [vmem:[#allocation7 + $0xf8] sm:$0xff]
    %v127 = vld [vmem:[#allocation7 + $0x100] sm:$0xff]
    %v128 = vld [vmem:[#allocation7 + $0x108] sm:$0xff]
    %v129 = vld [vmem:[#allocation7 + $0x110] sm:$0xff]
    %v130 = vld [vmem:[#allocation7 + $0x118] sm:$0xff]
    %v131 = vld [vmem:[#allocation7 + $0x120] sm:$0xff]
    %v132 = vld [vmem:[#allocation7 + $0x128] sm:$0xff]
    %v133 = vld [vmem:[#allocation7 + $0x130] sm:$0xff]
    %v134 = vld [vmem:[#allocation7 + $0x138] sm:$0xff]
    %v135 = vld [vmem:[#allocation7 + $0x140] sm:$0xff]
    %v136 = vld [vmem:[#allocation7 + $0x148] sm:$0xff]
    %v137 = vld [vmem:[#allocation7 + $0x150] sm:$0xff]
    %v138 = vld [vmem:[#allocation7 + $0x158] sm:$0xff]
    %v139 = vld [vmem:[#allocation7 + $0x160] sm:$0xff]
    %v140 = vld [vmem:[#allocation7 + $0x168] sm:$0xff]
    %v141 = vld [vmem:[#allocation7 + $0x170] sm:$0xff]
    %v142 = vld [vmem:[#allocation7 + $0x178] sm:$0xff]
    %v143 = vld [vmem:[%s2] sm:$0x7]
    %v145 = vlaneseq
    %v146 = vshrl.u32 %v145, 7
    %v147 = vsub.s32 0, %v146
    %v148 = vrot.slane %v143, %v147
    %v149 = vlaneseq
    %v150 = vshrl.u32 %v149, 7
    %v151 = vsub.s32 1, %v150
    %v152 = vrot.slane %v143, %v151
    %v153 = vlaneseq
    %v154 = vshrl.u32 %v153, 7
    %v155 = vsub.s32 2, %v154
    %v156 = vrot.slane %v143, %v155
    %160 = vmatprep.subr.mxu0 %v96
    %161 = vmatpush1.msra.mxu0 %v95
    %162 = vmatprep.subr.mxu0 %v99
    %163 = vmatpush1.msra.mxu0 %v98
    %164 = vmatprep.subr.mxu0 %v102
    %165 = vmatpush1.msra.mxu0 %v101
    %166 = vmatprep.subr.mxu0 %v105
    %167 = vmatpush1.msra.mxu0 %v104
    %168 = vmatprep.subr.mxu0 %v108
    %169 = vmatpush1.msra.mxu0 %v107
    %170 = vmatprep.subr.mxu0 %v111
    %171 = vmatpush1.msra.mxu0 %v110
    %172 = vmatprep.subr.mxu0 %v114
    %173 = vmatpush1.msra.mxu0 %v113
    %174 = vmatprep.subr.mxu0 %v117
    %175 = vmatpush1.msra.mxu0 %v116
    %176 = vmatprep.subr.mxu0 %v120
    %177 = vmatpush1.msra.mxu0 %v119
    %178 = vmatprep.subr.mxu0 %v123
    %179 = vmatpush1.msra.mxu0 %v122
    %180 = vmatprep.subr.mxu0 %v126
    %181 = vmatpush1.msra.mxu0 %v125
    %182 = vmatprep.subr.mxu0 %v129
    %183 = vmatpush1.msra.mxu0 %v128
    %184 = vmatprep.subr.mxu0 %v132
    %185 = vmatpush1.msra.mxu0 %v131
    %186 = vmatprep.subr.mxu0 %v135
    %187 = vmatpush1.msra.mxu0 %v134
    %188 = vmatprep.subr.mxu0 %v138
    %189 = vmatpush1.msra.mxu0 %v137
    %190 = vmatprep.subr.mxu0 %v141
    %191 = vmatpush1.msra.mxu0 %v140
    %192 = vmatprep.subr.mxu0 0.0
    %193 = vmatpush1.msra.mxu0 0.0
    %194 = vmatprep.subr.mxu0 0.0
    %195 = vmatpush1.msra.mxu0 0.0
    %196 = vmatprep.subr.mxu0 0.0
    %197 = vmatpush1.msra.mxu0 0.0
    %198 = vmatprep.subr.mxu0 0.0
    %199 = vmatpush1.msra.mxu0 0.0
    %200 = vmatprep.subr.mxu0 0.0
    %201 = vmatpush1.msra.mxu0 0.0
    %202 = vmatprep.subr.mxu0 0.0
    %203 = vmatpush1.msra.mxu0 0.0
    %204 = vmatprep.subr.mxu0 0.0
    %205 = vmatpush1.msra.mxu0 0.0
    %206 = vmatprep.subr.mxu0 0.0
    %207 = vmatpush1.msra.mxu0 0.0
    %208 = vmatprep.subr.mxu0 0.0
    %209 = vmatpush1.msra.mxu0 0.0
    %210 = vmatprep.subr.mxu0 0.0
    %211 = vmatpush1.msra.mxu0 0.0
    %212 = vmatprep.subr.mxu0 0.0
    %213 = vmatpush1.msra.mxu0 0.0
    %214 = vmatprep.subr.mxu0 0.0
    %215 = vmatpush1.msra.mxu0 0.0
    %216 = vmatprep.subr.mxu0 0.0
    %217 = vmatpush1.msra.mxu0 0.0
    %218 = vmatprep.subr.mxu0 0.0
    %219 = vmatpush1.msra.mxu0 0.0
    %220 = vmatprep.subr.mxu0 0.0
    %221 = vmatpush1.msra.mxu0 0.0
    %222 = vmatprep.subr.mxu0 0.0
    %223 = vmatpush1.msra.mxu0 0.0
    %224 = vmatprep.mubr.f32.mxu0 0.0
    %225 = vmatmul.mubr.f32.gmra.mrb[0].mxu0 %v87
    %v226 = vpop.f32.mrb[0].mxu0
    %v227 = vadd.f32 %v148, %v226
    %v228 = vpop.f32.mrb[0].mxu0
    %v229 = vadd.f32 %v152, %v228
    %230 = vmatprep.mubr.f32.mxu0 0.0
    %231 = vmatmul.mubr.f32.gmra.mrb[0].mxu0 %v88
    %v232 = vpop.f32.mrb[0].mxu0
    %v233 = vadd.f32 %v148, %v232
    %v234 = vpop.f32.mrb[0].mxu0
    %v235 = vadd.f32 %v152, %v234
    %236 = vmatprep.mubr.f32.mxu0 0.0
    %237 = vmatmul.mubr.f32.gmra.mrb[0].mxu0 %v89
    %v238 = vpop.f32.mrb[0].mxu0
    %v239 = vadd.f32 %v148, %v238
    %v240 = vpop.f32.mrb[0].mxu0
    %v241 = vadd.f32 %v152, %v240
    %242 = vmatprep.mubr.f32.mxu0 0.0
    %243 = vmatmul.mubr.f32.gmra.mrb[0].mxu0 %v90
    %v244 = vpop.f32.mrb[0].mxu0
    %v245 = vadd.f32 %v148, %v244
    %v246 = vpop.f32.mrb[0].mxu0
    %v247 = vadd.f32 %v152, %v246
    %248 = vmatprep.mubr.f32.mxu0 0.0
    %249 = vmatmul.mubr.f32.gmra.mrb[0].mxu0 %v91
    %v250 = vpop.f32.mrb[0].mxu0
    %v251 = vadd.f32 %v148, %v250
    %v252 = vpop.f32.mrb[0].mxu0
    %v253 = vadd.f32 %v152, %v252
    %254 = vmatprep.mubr.f32.mxu0 0.0
    %255 = vmatmul.mubr.f32.gmra.mrb[0].mxu0 %v92
    %v256 = vpop.f32.mrb[0].mxu0
    %v257 = vadd.f32 %v148, %v256
    %v258 = vpop.f32.mrb[0].mxu0
    %v259 = vadd.f32 %v152, %v258
    %260 = vmatprep.mubr.f32.mxu0 0.0
    %261 = vmatmul.mubr.f32.gmra.mrb[0].mxu0 %v93
    %v262 = vpop.f32.mrb[0].mxu0
    %v263 = vadd.f32 %v148, %v262
    %v264 = vpop.f32.mrb[0].mxu0
    %v265 = vadd.f32 %v152, %v264
    %266 = vmatprep.mubr.f32.mxu0 0.0
    %267 = vmatmul.mubr.f32.gmra.mrb[0].mxu0 %v94
    %v268 = vpop.f32.mrb[0].mxu0
    %v269 = vadd.f32 %v148, %v268
    %v270 = vpop.f32.mrb[0].mxu0
    %v271 = vadd.f32 %v152, %v270
    %272 = vdwg.mxu0
    %273 = vmatprep.subr.mxu0 0.0
    %274 = vmatpush1.msra.mxu0 %v97
    %275 = vmatprep.subr.mxu0 0.0
    %276 = vmatpush1.msra.mxu0 %v100
    %277 = vmatprep.subr.mxu0 0.0
    %278 = vmatpush1.msra.mxu0 %v103
    %279 = vmatprep.subr.mxu0 0.0
    %280 = vmatpush1.msra.mxu0 %v106
    %281 = vmatprep.subr.mxu0 0.0
    %282 = vmatpush1.msra.mxu0 %v109
    %283 = vmatprep.subr.mxu0 0.0
    %284 = vmatpush1.msra.mxu0 %v112
    %285 = vmatprep.subr.mxu0 0.0
    %286 = vmatpush1.msra.mxu0 %v115
    %287 = vmatprep.subr.mxu0 0.0
    %288 = vmatpush1.msra.mxu0 %v118
    %289 = vmatprep.subr.mxu0 0.0
    %290 = vmatpush1.msra.mxu0 %v121
    %291 = vmatprep.subr.mxu0 0.0
    %292 = vmatpush1.msra.mxu0 %v124
    %293 = vmatprep.subr.mxu0 0.0
    %294 = vmatpush1.msra.mxu0 %v127
    %295 = vmatprep.subr.mxu0 0.0
    %296 = vmatpush1.msra.mxu0 %v130
    %297 = vmatprep.subr.mxu0 0.0
    %298 = vmatpush1.msra.mxu0 %v133
    %299 = vmatprep.subr.mxu0 0.0
    %300 = vmatpush1.msra.mxu0 %v136
    %301 = vmatprep.subr.mxu0 0.0
    %302 = vmatpush1.msra.mxu0 %v139
    %303 = vmatprep.subr.mxu0 0.0
    %304 = vmatpush1.msra.mxu0 %v142
    %305 = vmatprep.subr.mxu0 0.0
    %306 = vmatpush1.msra.mxu0 0.0
    %307 = vmatprep.subr.mxu0 0.0
    %308 = vmatpush1.msra.mxu0 0.0
    %309 = vmatprep.subr.mxu0 0.0
    %310 = vmatpush1.msra.mxu0 0.0
    %311 = vmatprep.subr.mxu0 0.0
    %312 = vmatpush1.msra.mxu0 0.0
    %313 = vmatprep.subr.mxu0 0.0
    %314 = vmatpush1.msra.mxu0 0.0
    %315 = vmatprep.subr.mxu0 0.0
    %316 = vmatpush1.msra.mxu0 0.0
    %317 = vmatprep.subr.mxu0 0.0
    %318 = vmatpush1.msra.mxu0 0.0
    %319 = vmatprep.subr.mxu0 0.0
    %320 = vmatpush1.msra.mxu0 0.0
    %321 = vmatprep.subr.mxu0 0.0
    %322 = vmatpush1.msra.mxu0 0.0
    %323 = vmatprep.subr.mxu0 0.0
    %324 = vmatpush1.msra.mxu0 0.0
    %325 = vmatprep.subr.mxu0 0.0
    %326 = vmatpush1.msra.mxu0 0.0
    %327 = vmatprep.subr.mxu0 0.0
    %328 = vmatpush1.msra.mxu0 0.0
    %329 = vmatprep.subr.mxu0 0.0
    %330 = vmatpush1.msra.mxu0 0.0
    %331 = vmatprep.subr.mxu0 0.0
    %332 = vmatpush1.msra.mxu0 0.0
    %333 = vmatprep.subr.mxu0 0.0
    %334 = vmatpush1.msra.mxu0 0.0
    %335 = vmatprep.subr.mxu0 0.0
    %336 = vmatpush1.msra.mxu0 0.0
    %337 = vmatprep.mubr.f32.mxu0 0.0
    %338 = vmatmul.mubr.f32.gmra.mrb[0].mxu0 %v87
    %v339 = vpop.f32.mrb[0].mxu0
    %v340 = vadd.f32 %v156, %v339
    %v341 = vpop.f32.mrb[0].mxu0
    %342 = vmatprep.mubr.f32.mxu0 0.0
    %343 = vmatmul.mubr.f32.gmra.mrb[0].mxu0 %v88
    %v344 = vpop.f32.mrb[0].mxu0
    %v345 = vadd.f32 %v156, %v344
    %v346 = vpop.f32.mrb[0].mxu0
    %347 = vmatprep.mubr.f32.mxu0 0.0
    %348 = vmatmul.mubr.f32.gmra.mrb[0].mxu0 %v89
    %v349 = vpop.f32.mrb[0].mxu0
    %v350 = vadd.f32 %v156, %v349
    %v351 = vpop.f32.mrb[0].mxu0
    %352 = vmatprep.mubr.f32.mxu0 0.0
    %353 = vmatmul.mubr.f32.gmra.mrb[0].mxu0 %v90
    %v354 = vpop.f32.mrb[0].mxu0
    %v355 = vadd.f32 %v156, %v354
    %v356 = vpop.f32.mrb[0].mxu0
    %357 = vmatprep.mubr.f32.mxu0 0.0
    %358 = vmatmul.mubr.f32.gmra.mrb[0].mxu0 %v91
    %v359 = vpop.f32.mrb[0].mxu0
    %v360 = vadd.f32 %v156, %v359
    %v361 = vpop.f32.mrb[0].mxu0
    %362 = vmatprep.mubr.f32.mxu0 0.0
    %363 = vmatmul.mubr.f32.gmra.mrb[0].mxu0 %v92
    %v364 = vpop.f32.mrb[0].mxu0
    %v365 = vadd.f32 %v156, %v364
    %v366 = vpop.f32.mrb[0].mxu0
    %367 = vmatprep.mubr.f32.mxu0 0.0
    %368 = vmatmul.mubr.f32.gmra.mrb[0].mxu0 %v93
    %v369 = vpop.f32.mrb[0].mxu0
    %v370 = vadd.f32 %v156, %v369
    %v371 = vpop.f32.mrb[0].mxu0
    %372 = vmatprep.mubr.f32.mxu0 0.0
    %373 = vmatmul.mubr.f32.gmra.mrb[0].mxu0 %v94
    %v374 = vpop.f32.mrb[0].mxu0
    %v375 = vadd.f32 %v156, %v374
    %v376 = vpop.f32.mrb[0].mxu0
    %377 = vdwg.mxu0
    %378 = vst [vmem:[#allocation3] sm:$0xff] %v227
    %379 = vst [vmem:[#allocation3 + $0x8] sm:$0xff] %v229
    %380 = vst [vmem:[#allocation3 + $0x10] sm:$0xff] %v340
    %381 = vst [vmem:[#allocation3 + $0x18] sm:$0xff] %v233
    %382 = vst [vmem:[#allocation3 + $0x20] sm:$0xff] %v235
    %383 = vst [vmem:[#allocation3 + $0x28] sm:$0xff] %v345
    %384 = vst [vmem:[#allocation3 + $0x30] sm:$0xff] %v239
    %385 = vst [vmem:[#allocation3 + $0x38] sm:$0xff] %v241
    %386 = vst [vmem:[#allocation3 + $0x40] sm:$0xff] %v350
    %387 = vst [vmem:[#allocation3 + $0x48] sm:$0xff] %v245
    %388 = vst [vmem:[#allocation3 + $0x50] sm:$0xff] %v247
    %389 = vst [vmem:[#allocation3 + $0x58] sm:$0xff] %v355
    %390 = vst [vmem:[#allocation3 + $0x60] sm:$0xff] %v251
    %391 = vst [vmem:[#allocation3 + $0x68] sm:$0xff] %v253
    %392 = vst [vmem:[#allocation3 + $0x70] sm:$0xff] %v360
    %393 = vst [vmem:[#allocation3 + $0x78] sm:$0xff] %v257
    %394 = vst [vmem:[#allocation3 + $0x80] sm:$0xff] %v259
    %395 = vst [vmem:[#allocation3 + $0x88] sm:$0xff] %v365
    %396 = vst [vmem:[#allocation3 + $0x90] sm:$0xff] %v263
    %397 = vst [vmem:[#allocation3 + $0x98] sm:$0xff] %v265
    %398 = vst [vmem:[#allocation3 + $0xa0] sm:$0xff] %v370
    %399 = vst [vmem:[#allocation3 + $0xa8] sm:$0xff] %v269
    %400 = vst [vmem:[#allocation3 + $0xb0] sm:$0xff] %v271
    %401 = vst [vmem:[#allocation3 + $0xb8] sm:$0xff] %v375
    %v402 = vld [vmem:[#allocation9] sm:$0xff]
    %v403 = vld [vmem:[#allocation9 + $0x8] sm:$0xff]
    %v404 = vld [vmem:[#allocation9 + $0x10] sm:$0xff]
    %v405 = vld [vmem:[#allocation9 + $0x18] sm:$0xff]
    %v406 = vld [vmem:[#allocation9 + $0x20] sm:$0xff]
    %v407 = vld [vmem:[#allocation9 + $0x28] sm:$0xff]
    %v408 = vld [vmem:[#allocation9 + $0x30] sm:$0xff]
    %v409 = vld [vmem:[#allocation9 + $0x38] sm:$0xff]
    %v410 = vld [vmem:[#allocation9 + $0x40] sm:$0xff]
    %v411 = vld [vmem:[#allocation9 + $0x48] sm:$0xff]
    %v412 = vld [vmem:[#allocation9 + $0x50] sm:$0xff]
    %v413 = vld [vmem:[#allocation9 + $0x58] sm:$0xff]
    %v414 = vld [vmem:[#allocation9 + $0x60] sm:$0xff]
    %v415 = vld [vmem:[#allocation9 + $0x68] sm:$0xff]
    %v416 = vld [vmem:[#allocation9 + $0x70] sm:$0xff]
    %v417 = vld [vmem:[#allocation9 + $0x78] sm:$0xff]
    %v418 = vld [vmem:[#allocation9 + $0x80] sm:$0xff]
    %v419 = vld [vmem:[#allocation9 + $0x88] sm:$0xff]
    %v420 = vld [vmem:[#allocation9 + $0x90] sm:$0xff]
    %v421 = vld [vmem:[#allocation9 + $0x98] sm:$0xff]
    %v422 = vld [vmem:[#allocation9 + $0xa0] sm:$0xff]
    %v423 = vld [vmem:[#allocation9 + $0xa8] sm:$0xff]
    %v424 = vld [vmem:[#allocation9 + $0xb0] sm:$0xff]
    %v425 = vld [vmem:[#allocation9 + $0xb8] sm:$0xff]
    %v426 = vld [vmem:[#allocation9 + $0xc0] sm:$0xff]
    %v427 = vld [vmem:[#allocation9 + $0xc8] sm:$0xff]
    %v428 = vld [vmem:[#allocation9 + $0xd0] sm:$0xff]
    %v429 = vld [vmem:[#allocation9 + $0xd8] sm:$0xff]
    %v430 = vld [vmem:[#allocation9 + $0xe0] sm:$0xff]
    %v431 = vld [vmem:[#allocation9 + $0xe8] sm:$0xff]
    %v432 = vld [vmem:[#allocation9 + $0xf0] sm:$0xff]
    %v433 = vld [vmem:[#allocation9 + $0xf8] sm:$0xff]
    %v434 = vld [vmem:[#allocation9 + $0x100] sm:$0xff]
    %v435 = vld [vmem:[#allocation9 + $0x108] sm:$0xff]
    %v436 = vld [vmem:[#allocation9 + $0x110] sm:$0xff]
    %v437 = vld [vmem:[#allocation9 + $0x118] sm:$0xff]
    %v438 = vld [vmem:[#allocation9 + $0x120] sm:$0xff]
    %v439 = vld [vmem:[#allocation9 + $0x128] sm:$0xff]
    %v440 = vld [vmem:[#allocation9 + $0x130] sm:$0xff]
    %v441 = vld [vmem:[#allocation9 + $0x138] sm:$0xff]
    %v442 = vld [vmem:[#allocation9 + $0x140] sm:$0xff]
    %v443 = vld [vmem:[#allocation9 + $0x148] sm:$0xff]
    %v444 = vld [vmem:[#allocation9 + $0x150] sm:$0xff]
    %v445 = vld [vmem:[#allocation9 + $0x158] sm:$0xff]
    %v446 = vld [vmem:[#allocation9 + $0x160] sm:$0xff]
    %v447 = vld [vmem:[#allocation9 + $0x168] sm:$0xff]
    %v448 = vld [vmem:[#allocation9 + $0x170] sm:$0xff]
    %v449 = vld [vmem:[#allocation9 + $0x178] sm:$0xff]
    %v450 = vld [vmem:[%s4] sm:$0x1]
    %v452 = vlaneseq
    %v453 = vshrl.u32 %v452, 7
    %v454 = vsub.s32 0, %v453
    %v455 = vrot.slane %v450, %v454
    %v457 = vld [vmem:[#allocation2] sm:$0xff]
    %v458 = vld [vmem:[#allocation3] sm:$0xff]
    %v459 = vld [vmem:[#allocation3 + $0x8] sm:$0xff]
    %v460 = vld [vmem:[#allocation3 + $0x10] sm:$0xff]
    %461 = vmatprep.subr.mxu0 %v403
    %462 = vmatpush1.msra.mxu0 %v402
    %463 = vmatprep.subr.mxu0 %v406
    %464 = vmatpush1.msra.mxu0 %v405
    %465 = vmatprep.subr.mxu0 %v409
    %466 = vmatpush1.msra.mxu0 %v408
    %467 = vmatprep.subr.mxu0 %v412
    %468 = vmatpush1.msra.mxu0 %v411
    %469 = vmatprep.subr.mxu0 %v415
    %470 = vmatpush1.msra.mxu0 %v414
    %471 = vmatprep.subr.mxu0 %v418
    %472 = vmatpush1.msra.mxu0 %v417
    %473 = vmatprep.subr.mxu0 %v421
    %474 = vmatpush1.msra.mxu0 %v420
    %475 = vmatprep.subr.mxu0 %v424
    %476 = vmatpush1.msra.mxu0 %v423
    %477 = vmatprep.subr.mxu0 %v427
    %478 = vmatpush1.msra.mxu0 %v426
    %479 = vmatprep.subr.mxu0 %v430
    %480 = vmatpush1.msra.mxu0 %v429
    %481 = vmatprep.subr.mxu0 %v433
    %482 = vmatpush1.msra.mxu0 %v432
    %483 = vmatprep.subr.mxu0 %v436
    %484 = vmatpush1.msra.mxu0 %v435
    %485 = vmatprep.subr.mxu0 %v439
    %486 = vmatpush1.msra.mxu0 %v438
    %487 = vmatprep.subr.mxu0 %v442
    %488 = vmatpush1.msra.mxu0 %v441
    %489 = vmatprep.subr.mxu0 %v445
    %490 = vmatpush1.msra.mxu0 %v444
    %491 = vmatprep.subr.mxu0 %v448
    %492 = vmatpush1.msra.mxu0 %v447
    %493 = vmatprep.subr.mxu0 0.0
    %494 = vmatpush1.msra.mxu0 0.0
    %495 = vmatprep.subr.mxu0 0.0
    %496 = vmatpush1.msra.mxu0 0.0
    %497 = vmatprep.subr.mxu0 0.0
    %498 = vmatpush1.msra.mxu0 0.0
    %499 = vmatprep.subr.mxu0 0.0
    %500 = vmatpush1.msra.mxu0 0.0
    %501 = vmatprep.subr.mxu0 0.0
    %502 = vmatpush1.msra.mxu0 0.0
    %503 = vmatprep.subr.mxu0 0.0
    %504 = vmatpush1.msra.mxu0 0.0
    %505 = vmatprep.subr.mxu0 0.0
    %506 = vmatpush1.msra.mxu0 0.0
    %507 = vmatprep.subr.mxu0 0.0
    %508 = vmatpush1.msra.mxu0 0.0
    %509 = vmatprep.subr.mxu0 0.0
    %510 = vmatpush1.msra.mxu0 0.0
    %511 = vmatprep.subr.mxu0 0.0
    %512 = vmatpush1.msra.mxu0 0.0
    %513 = vmatprep.subr.mxu0 0.0
    %514 = vmatpush1.msra.mxu0 0.0
    %515 = vmatprep.subr.mxu0 0.0
    %516 = vmatpush1.msra.mxu0 0.0
    %517 = vmatprep.subr.mxu0 0.0
    %518 = vmatpush1.msra.mxu0 0.0
    %519 = vmatprep.subr.mxu0 0.0
    %520 = vmatpush1.msra.mxu0 0.0
    %521 = vmatprep.subr.mxu0 0.0
    %522 = vmatpush1.msra.mxu0 0.0
    %523 = vmatprep.subr.mxu0 0.0
    %524 = vmatpush1.msra.mxu0 0.0
    %525 = vmatprep.mubr.f32.mxu0 0.0
    %526 = vmatmul.mubr.f32.gmra.mrb[0].mxu0 %v457
    %v527 = vpop.f32.mrb[0].mxu0
    %v528 = vadd.f32 0.0, %v527
    %v529 = vpop.f32.mrb[0].mxu0
    %v530 = vadd.f32 0.0, %v529
    %531 = vdwg.mxu0
    %532 = vmatprep.subr.mxu0 0.0
    %533 = vmatpush1.msra.mxu0 %v404
    %534 = vmatprep.subr.mxu0 0.0
    %535 = vmatpush1.msra.mxu0 %v407
    %536 = vmatprep.subr.mxu0 0.0
    %537 = vmatpush1.msra.mxu0 %v410
    %538 = vmatprep.subr.mxu0 0.0
    %539 = vmatpush1.msra.mxu0 %v413
    %540 = vmatprep.subr.mxu0 0.0
    %541 = vmatpush1.msra.mxu0 %v416
    %542 = vmatprep.subr.mxu0 0.0
    %543 = vmatpush1.msra.mxu0 %v419
    %544 = vmatprep.subr.mxu0 0.0
    %545 = vmatpush1.msra.mxu0 %v422
    %546 = vmatprep.subr.mxu0 0.0
    %547 = vmatpush1.msra.mxu0 %v425
    %548 = vmatprep.subr.mxu0 0.0
    %549 = vmatpush1.msra.mxu0 %v428
    %550 = vmatprep.subr.mxu0 0.0
    %551 = vmatpush1.msra.mxu0 %v431
    %552 = vmatprep.subr.mxu0 0.0
    %553 = vmatpush1.msra.mxu0 %v434
    %554 = vmatprep.subr.mxu0 0.0
    %555 = vmatpush1.msra.mxu0 %v437
    %556 = vmatprep.subr.mxu0 0.0
    %557 = vmatpush1.msra.mxu0 %v440
    %558 = vmatprep.subr.mxu0 0.0
    %559 = vmatpush1.msra.mxu0 %v443
    %560 = vmatprep.subr.mxu0 0.0
    %561 = vmatpush1.msra.mxu0 %v446
    %562 = vmatprep.subr.mxu0 0.0
    %563 = vmatpush1.msra.mxu0 %v449
    %564 = vmatprep.subr.mxu0 0.0
    %565 = vmatpush1.msra.mxu0 0.0
    %566 = vmatprep.subr.mxu0 0.0
    %567 = vmatpush1.msra.mxu0 0.0
    %568 = vmatprep.subr.mxu0 0.0
    %569 = vmatpush1.msra.mxu0 0.0
    %570 = vmatprep.subr.mxu0 0.0
    %571 = vmatpush1.msra.mxu0 0.0
    %572 = vmatprep.subr.mxu0 0.0
    %573 = vmatpush1.msra.mxu0 0.0
    %574 = vmatprep.subr.mxu0 0.0
    %575 = vmatpush1.msra.mxu0 0.0
    %576 = vmatprep.subr.mxu0 0.0
    %577 = vmatpush1.msra.mxu0 0.0
    %578 = vmatprep.subr.mxu0 0.0
    %579 = vmatpush1.msra.mxu0 0.0
    %580 = vmatprep.subr.mxu0 0.0
    %581 = vmatpush1.msra.mxu0 0.0
    %582 = vmatprep.subr.mxu0 0.0
    %583 = vmatpush1.msra.mxu0 0.0
    %584 = vmatprep.subr.mxu0 0.0
    %585 = vmatpush1.msra.mxu0 0.0
    %586 = vmatprep.subr.mxu0 0.0
    %587 = vmatpush1.msra.mxu0 0.0
    %588 = vmatprep.subr.mxu0 0.0
    %589 = vmatpush1.msra.mxu0 0.0
    %590 = vmatprep.subr.mxu0 0.0
    %591 = vmatpush1.msra.mxu0 0.0
    %592 = vmatprep.subr.mxu0 0.0
    %593 = vmatpush1.msra.mxu0 0.0
    %594 = vmatprep.subr.mxu0 0.0
    %595 = vmatpush1.msra.mxu0 0.0
    %596 = vmatprep.mubr.f32.mxu0 0.0
    %597 = vmatmul.mubr.f32.gmra.mrb[0].mxu0 %v457
    %v598 = vpop.f32.mrb[0].mxu0
    %v599 = vadd.f32 0.0, %v598
    %v600 = vpop.f32.mrb[0].mxu0
    %601 = vdwg.mxu0
    %v602 = vadd.f32 %v458, %v528
    %v603 = vxor.u32 %v602, 2147483648
    %v604 = vmul.f32 %v603, 1.442695
    %v605 = vpow.pop %v604
    %v606 = vadd.f32 %v605, 1.0
    %v607 = vrcp.pop %v606
    %v608 = vmul.f32 1.0, %v607
    %v609 = vadd.f32 %v459, %v530
    %v610 = vxor.u32 %v609, 2147483648
    %v611 = vmul.f32 %v610, 1.442695
    %v612 = vpow.pop %v611
    %v613 = vadd.f32 %v612, 1.0
    %v614 = vrcp.pop %v613
    %v615 = vmul.f32 1.0, %v614
    %v616 = vadd.f32 %v599, %v455
    %v617 = vmul.f32 %v608, %v616
    %v618 = vadd.f32 %v460, %v617
    %v619 = vtanh.pop %v618
    %v620 = vsub.f32 1.0, %v615
    %v621 = vmul.f32 %v620, %v619
    %v622 = vmul.f32 %v615, %v457
    %v623 = vadd.f32 %v621, %v622
    %s624 = scalar_lea.vmem [#allocation3], 24
    %v625 = vld [vmem:[%s624] sm:$0xff]
    %v626 = vld [vmem:[%s624 + $0x8] sm:$0xff]
    %v627 = vld [vmem:[%s624 + $0x10] sm:$0xff]
    %628 = vmatprep.subr.mxu0 %v403
    %629 = vmatpush1.msra.mxu0 %v402
    %630 = vmatprep.subr.mxu0 %v406
    %631 = vmatpush1.msra.mxu0 %v405
    %632 = vmatprep.subr.mxu0 %v409
    %633 = vmatpush1.msra.mxu0 %v408
    %634 = vmatprep.subr.mxu0 %v412
    %635 = vmatpush1.msra.mxu0 %v411
    %636 = vmatprep.subr.mxu0 %v415
    %637 = vmatpush1.msra.mxu0 %v414
    %638 = vmatprep.subr.mxu0 %v418
    %639 = vmatpush1.msra.mxu0 %v417
    %640 = vmatprep.subr.mxu0 %v421
    %641 = vmatpush1.msra.mxu0 %v420
    %642 = vmatprep.subr.mxu0 %v424
    %643 = vmatpush1.msra.mxu0 %v423
    %644 = vmatprep.subr.mxu0 %v427
    %645 = vmatpush1.msra.mxu0 %v426
    %646 = vmatprep.subr.mxu0 %v430
    %647 = vmatpush1.msra.mxu0 %v429
    %648 = vmatprep.subr.mxu0 %v433
    %649 = vmatpush1.msra.mxu0 %v432
    %650 = vmatprep.subr.mxu0 %v436
    %651 = vmatpush1.msra.mxu0 %v435
    %652 = vmatprep.subr.mxu0 %v439
    %653 = vmatpush1.msra.mxu0 %v438
    %654 = vmatprep.subr.mxu0 %v442
    %655 = vmatpush1.msra.mxu0 %v441
    %656 = vmatprep.subr.mxu0 %v445
    %657 = vmatpush1.msra.mxu0 %v444
    %658 = vmatprep.subr.mxu0 %v448
    %659 = vmatpush1.msra.mxu0 %v447
    %660 = vmatprep.subr.mxu0 0.0
    %661 = vmatpush1.msra.mxu0 0.0
    %662 = vmatprep.subr.mxu0 0.0
    %663 = vmatpush1.msra.mxu0 0.0
    %664 = vmatprep.subr.mxu0 0.0
    %665 = vmatpush1.msra.mxu0 0.0
    %666 = vmatprep.subr.mxu0 0.0
    %667 = vmatpush1.msra.mxu0 0.0
    %668 = vmatprep.subr.mxu0 0.0
    %669 = vmatpush1.msra.mxu0 0.0
    %670 = vmatprep.subr.mxu0 0.0
    %671 = vmatpush1.msra.mxu0 0.0
    %672 = vmatprep.subr.mxu0 0.0
    %673 = vmatpush1.msra.mxu0 0.0
    %674 = vmatprep.subr.mxu0 0.0
    %675 = vmatpush1.msra.mxu0 0.0
    %676 = vmatprep.subr.mxu0 0.0
    %677 = vmatpush1.msra.mxu0 0.0
    %678 = vmatprep.subr.mxu0 0.0
    %679 = vmatpush1.msra.mxu0 0.0
    %680 = vmatprep.subr.mxu0 0.0
    %681 = vmatpush1.msra.mxu0 0.0
    %682 = vmatprep.subr.mxu0 0.0
    %683 = vmatpush1.msra.mxu0 0.0
    %684 = vmatprep.subr.mxu0 0.0
    %685 = vmatpush1.msra.mxu0 0.0
    %686 = vmatprep.subr.mxu0 0.0
    %687 = vmatpush1.msra.mxu0 0.0
    %688 = vmatprep.subr.mxu0 0.0
    %689 = vmatpush1.msra.mxu0 0.0
    %690 = vmatprep.subr.mxu0 0.0
    %691 = vmatpush1.msra.mxu0 0.0
    %692 = vmatprep.mubr.f32.mxu0 0.0
    %693 = vmatmul.mubr.f32.gmra.mrb[0].mxu0 %v623
    %v694 = vpop.f32.mrb[0].mxu0
    %v695 = vadd.f32 0.0, %v694
    %v696 = vpop.f32.mrb[0].mxu0
    %v697 = vadd.f32 0.0, %v696
    %698 = vdwg.mxu0
    %699 = vmatprep.subr.mxu0 0.0
    %700 = vmatpush1.msra.mxu0 %v404
    %701 = vmatprep.subr.mxu0 0.0
    %702 = vmatpush1.msra.mxu0 %v407
    %703 = vmatprep.subr.mxu0 0.0
    %704 = vmatpush1.msra.mxu0 %v410
    %705 = vmatprep.subr.mxu0 0.0
    %706 = vmatpush1.msra.mxu0 %v413
    %707 = vmatprep.subr.mxu0 0.0
    %708 = vmatpush1.msra.mxu0 %v416
    %709 = vmatprep.subr.mxu0 0.0
    %710 = vmatpush1.msra.mxu0 %v419
    %711 = vmatprep.subr.mxu0 0.0
    %712 = vmatpush1.msra.mxu0 %v422
    %713 = vmatprep.subr.mxu0 0.0
    %714 = vmatpush1.msra.mxu0 %v425
    %715 = vmatprep.subr.mxu0 0.0
    %716 = vmatpush1.msra.mxu0 %v428
    %717 = vmatprep.subr.mxu0 0.0
    %718 = vmatpush1.msra.mxu0 %v431
    %719 = vmatprep.subr.mxu0 0.0
    %720 = vmatpush1.msra.mxu0 %v434
    %721 = vmatprep.subr.mxu0 0.0
    %722 = vmatpush1.msra.mxu0 %v437
    %723 = vmatprep.subr.mxu0 0.0
    %724 = vmatpush1.msra.mxu0 %v440
    %725 = vmatprep.subr.mxu0 0.0
    %726 = vmatpush1.msra.mxu0 %v443
    %727 = vmatprep.subr.mxu0 0.0
    %728 = vmatpush1.msra.mxu0 %v446
    %729 = vmatprep.subr.mxu0 0.0
    %730 = vmatpush1.msra.mxu0 %v449
    %731 = vmatprep.subr.mxu0 0.0
    %732 = vmatpush1.msra.mxu0 0.0
    %733 = vmatprep.subr.mxu0 0.0
    %734 = vmatpush1.msra.mxu0 0.0
    %735 = vmatprep.subr.mxu0 0.0
    %736 = vmatpush1.msra.mxu0 0.0
    %737 = vmatprep.subr.mxu0 0.0
    %738 = vmatpush1.msra.mxu0 0.0
    %739 = vmatprep.subr.mxu0 0.0
    %740 = vmatpush1.msra.mxu0 0.0
    %741 = vmatprep.subr.mxu0 0.0
    %742 = vmatpush1.msra.mxu0 0.0
    %743 = vmatprep.subr.mxu0 0.0
    %744 = vmatpush1.msra.mxu0 0.0
    %745 = vmatprep.subr.mxu0 0.0
    %746 = vmatpush1.msra.mxu0 0.0
    %747 = vmatprep.subr.mxu0 0.0
    %748 = vmatpush1.msra.mxu0 0.0
    %749 = vmatprep.subr.mxu0 0.0
    %750 = vmatpush1.msra.mxu0 0.0
    %751 = vmatprep.subr.mxu0 0.0
    %752 = vmatpush1.msra.mxu0 0.0
    %753 = vmatprep.subr.mxu0 0.0
    %754 = vmatpush1.msra.mxu0 0.0
    %755 = vmatprep.subr.mxu0 0.0
    %756 = vmatpush1.msra.mxu0 0.0
    %757 = vmatprep.subr.mxu0 0.0
    %758 = vmatpush1.msra.mxu0 0.0
    %759 = vmatprep.subr.mxu0 0.0
    %760 = vmatpush1.msra.mxu0 0.0
    %761 = vmatprep.subr.mxu0 0.0
    %762 = vmatpush1.msra.mxu0 0.0
    %763 = vmatprep.mubr.f32.mxu0 0.0
    %764 = vmatmul.mubr.f32.gmra.mrb[0].mxu0 %v623
    %v765 = vpop.f32.mrb[0].mxu0
    %v766 = vadd.f32 0.0, %v765
    %v767 = vpop.f32.mrb[0].mxu0
    %768 = vdwg.mxu0
    %v769 = vadd.f32 %v625, %v695
    %v770 = vxor.u32 %v769, 2147483648
    %v771 = vmul.f32 %v770, 1.442695
    %v772 = vpow.pop %v771
    %v773 = vadd.f32 %v772, 1.0
    %v774 = vrcp.pop %v773
    %v775 = vmul.f32 1.0, %v774
    %v776 = vadd.f32 %v626, %v697
    %v777 = vxor.u32 %v776, 2147483648
    %v778 = vmul.f32 %v777, 1.442695
    %v779 = vpow.pop %v778
    %v780 = vadd.f32 %v779, 1.0
    %v781 = vrcp.pop %v780
    %v782 = vmul.f32 1.0, %v781
    %v783 = vadd.f32 %v766, %v455
    %v784 = vmul.f32 %v775, %v783
    %v785 = vadd.f32 %v627, %v784
    %v786 = vtanh.pop %v785
    %v787 = vsub.f32 1.0, %v782
    %v788 = vmul.f32 %v787, %v786
    %v789 = vmul.f32 %v782, %v623
    %v790 = vadd.f32 %v788, %v789
    %s791 = scalar_lea.vmem [#allocation3], 48
    %v792 = vld [vmem:[%s791] sm:$0xff]
    %v793 = vld [vmem:[%s791 + $0x8] sm:$0xff]
    %v794 = vld [vmem:[%s791 + $0x10] sm:$0xff]
    %795 = vmatprep.subr.mxu0 %v403
    %796 = vmatpush1.msra.mxu0 %v402
    %797 = vmatprep.subr.mxu0 %v406
    %798 = vmatpush1.msra.mxu0 %v405
    %799 = vmatprep.subr.mxu0 %v409
    %800 = vmatpush1.msra.mxu0 %v408
    %801 = vmatprep.subr.mxu0 %v412
    %802 = vmatpush1.msra.mxu0 %v411
    %803 = vmatprep.subr.mxu0 %v415
    %804 = vmatpush1.msra.mxu0 %v414
    %805 = vmatprep.subr.mxu0 %v418
    %806 = vmatpush1.msra.mxu0 %v417
    %807 = vmatprep.subr.mxu0 %v421
    %808 = vmatpush1.msra.mxu0 %v420
    %809 = vmatprep.subr.mxu0 %v424
    %810 = vmatpush1.msra.mxu0 %v423
    %811 = vmatprep.subr.mxu0 %v427
    %812 = vmatpush1.msra.mxu0 %v426
    %813 = vmatprep.subr.mxu0 %v430
    %814 = vmatpush1.msra.mxu0 %v429
    %815 = vmatprep.subr.mxu0 %v433
    %816 = vmatpush1.msra.mxu0 %v432
    %817 = vmatprep.subr.mxu0 %v436
    %818 = vmatpush1.msra.mxu0 %v435
    %819 = vmatprep.subr.mxu0 %v439
    %820 = vmatpush1.msra.mxu0 %v438
    %821 = vmatprep.subr.mxu0 %v442
    %822 = vmatpush1.msra.mxu0 %v441
    %823 = vmatprep.subr.mxu0 %v445
    %824 = vmatpush1.msra.mxu0 %v444
    %825 = vmatprep.subr.mxu0 %v448
    %826 = vmatpush1.msra.mxu0 %v447
    %827 = vmatprep.subr.mxu0 0.0
    %828 = vmatpush1.msra.mxu0 0.0
    %829 = vmatprep.subr.mxu0 0.0
    %830 = vmatpush1.msra.mxu0 0.0
    %831 = vmatprep.subr.mxu0 0.0
    %832 = vmatpush1.msra.mxu0 0.0
    %833 = vmatprep.subr.mxu0 0.0
    %834 = vmatpush1.msra.mxu0 0.0
    %835 = vmatprep.subr.mxu0 0.0
    %836 = vmatpush1.msra.mxu0 0.0
    %837 = vmatprep.subr.mxu0 0.0
    %838 = vmatpush1.msra.mxu0 0.0
    %839 = vmatprep.subr.mxu0 0.0
    %840 = vmatpush1.msra.mxu0 0.0
    %841 = vmatprep.subr.mxu0 0.0
    %842 = vmatpush1.msra.mxu0 0.0
    %843 = vmatprep.subr.mxu0 0.0
    %844 = vmatpush1.msra.mxu0 0.0
    %845 = vmatprep.subr.mxu0 0.0
    %846 = vmatpush1.msra.mxu0 0.0
    %847 = vmatprep.subr.mxu0 0.0
    %848 = vmatpush1.msra.mxu0 0.0
    %849 = vmatprep.subr.mxu0 0.0
    %850 = vmatpush1.msra.mxu0 0.0
    %851 = vmatprep.subr.mxu0 0.0
    %852 = vmatpush1.msra.mxu0 0.0
    %853 = vmatprep.subr.mxu0 0.0
    %854 = vmatpush1.msra.mxu0 0.0
    %855 = vmatprep.subr.mxu0 0.0
    %856 = vmatpush1.msra.mxu0 0.0
    %857 = vmatprep.subr.mxu0 0.0
    %858 = vmatpush1.msra.mxu0 0.0
    %859 = vmatprep.mubr.f32.mxu0 0.0
    %860 = vmatmul.mubr.f32.gmra.mrb[0].mxu0 %v790
    %v861 = vpop.f32.mrb[0].mxu0
    %v862 = vadd.f32 0.0, %v861
    %v863 = vpop.f32.mrb[0].mxu0
    %v864 = vadd.f32 0.0, %v863
    %865 = vdwg.mxu0
    %866 = vmatprep.subr.mxu0 0.0
    %867 = vmatpush1.msra.mxu0 %v404
    %868 = vmatprep.subr.mxu0 0.0
    %869 = vmatpush1.msra.mxu0 %v407
    %870 = vmatprep.subr.mxu0 0.0
    %871 = vmatpush1.msra.mxu0 %v410
    %872 = vmatprep.subr.mxu0 0.0
    %873 = vmatpush1.msra.mxu0 %v413
    %874 = vmatprep.subr.mxu0 0.0
    %875 = vmatpush1.msra.mxu0 %v416
    %876 = vmatprep.subr.mxu0 0.0
    %877 = vmatpush1.msra.mxu0 %v419
    %878 = vmatprep.subr.mxu0 0.0
    %879 = vmatpush1.msra.mxu0 %v422
    %880 = vmatprep.subr.mxu0 0.0
    %881 = vmatpush1.msra.mxu0 %v425
    %882 = vmatprep.subr.mxu0 0.0
    %883 = vmatpush1.msra.mxu0 %v428
    %884 = vmatprep.subr.mxu0 0.0
    %885 = vmatpush1.msra.mxu0 %v431
    %886 = vmatprep.subr.mxu0 0.0
    %887 = vmatpush1.msra.mxu0 %v434
    %888 = vmatprep.subr.mxu0 0.0
    %889 = vmatpush1.msra.mxu0 %v437
    %890 = vmatprep.subr.mxu0 0.0
    %891 = vmatpush1.msra.mxu0 %v440
    %892 = vmatprep.subr.mxu0 0.0
    %893 = vmatpush1.msra.mxu0 %v443
    %894 = vmatprep.subr.mxu0 0.0
    %895 = vmatpush1.msra.mxu0 %v446
    %896 = vmatprep.subr.mxu0 0.0
    %897 = vmatpush1.msra.mxu0 %v449
    %898 = vmatprep.subr.mxu0 0.0
    %899 = vmatpush1.msra.mxu0 0.0
    %900 = vmatprep.subr.mxu0 0.0
    %901 = vmatpush1.msra.mxu0 0.0
    %902 = vmatprep.subr.mxu0 0.0
    %903 = vmatpush1.msra.mxu0 0.0
    %904 = vmatprep.subr.mxu0 0.0
    %905 = vmatpush1.msra.mxu0 0.0
    %906 = vmatprep.subr.mxu0 0.0
    %907 = vmatpush1.msra.mxu0 0.0
    %908 = vmatprep.subr.mxu0 0.0
    %909 = vmatpush1.msra.mxu0 0.0
    %910 = vmatprep.subr.mxu0 0.0
    %911 = vmatpush1.msra.mxu0 0.0
    %912 = vmatprep.subr.mxu0 0.0
    %913 = vmatpush1.msra.mxu0 0.0
    %914 = vmatprep.subr.mxu0 0.0
    %915 = vmatpush1.msra.mxu0 0.0
    %916 = vmatprep.subr.mxu0 0.0
    %917 = vmatpush1.msra.mxu0 0.0
    %918 = vmatprep.subr.mxu0 0.0
    %919 = vmatpush1.msra.mxu0 0.0
    %920 = vmatprep.subr.mxu0 0.0
    %921 = vmatpush1.msra.mxu0 0.0
    %922 = vmatprep.subr.mxu0 0.0
    %923 = vmatpush1.msra.mxu0 0.0
    %924 = vmatprep.subr.mxu0 0.0
    %925 = vmatpush1.msra.mxu0 0.0
    %926 = vmatprep.subr.mxu0 0.0
    %927 = vmatpush1.msra.mxu0 0.0
    %928 = vmatprep.subr.mxu0 0.0
    %929 = vmatpush1.msra.mxu0 0.0
    %930 = vmatprep.mubr.f32.mxu0 0.0
    %931 = vmatmul.mubr.f32.gmra.mrb[0].mxu0 %v790
    %v932 = vpop.f32.mrb[0].mxu0
    %v933 = vadd.f32 0.0, %v932
    %v934 = vpop.f32.mrb[0].mxu0
    %935 = vdwg.mxu0
    %v936 = vadd.f32 %v792, %v862
    %v937 = vxor.u32 %v936, 2147483648
    %v938 = vmul.f32 %v937, 1.442695
    %v939 = vpow.pop %v938
    %v940 = vadd.f32 %v939, 1.0
    %v941 = vrcp.pop %v940
    %v942 = vmul.f32 1.0, %v941
    %v943 = vadd.f32 %v793, %v864
    %v944 = vxor.u32 %v943, 2147483648
    %v945 = vmul.f32 %v944, 1.442695
    %v946 = vpow.pop %v945
    %v947 = vadd.f32 %v946, 1.0
    %v948 = vrcp.pop %v947
    %v949 = vmul.f32 1.0, %v948
    %v950 = vadd.f32 %v933, %v455
    %v951 = vmul.f32 %v942, %v950
    %v952 = vadd.f32 %v794, %v951
    %v953 = vtanh.pop %v952
    %v954 = vsub.f32 1.0, %v949
    %v955 = vmul.f32 %v954, %v953
    %v956 = vmul.f32 %v949, %v790
    %v957 = vadd.f32 %v955, %v956
    %s958 = scalar_lea.vmem [#allocation3], 72
    %v959 = vld [vmem:[%s958] sm:$0xff]
    %v960 = vld [vmem:[%s958 + $0x8] sm:$0xff]
    %v961 = vld [vmem:[%s958 + $0x10] sm:$0xff]
    %962 = vmatprep.subr.mxu0 %v403
    %963 = vmatpush1.msra.mxu0 %v402
    %964 = vmatprep.subr.mxu0 %v406
    %965 = vmatpush1.msra.mxu0 %v405
    %966 = vmatprep.subr.mxu0 %v409
    %967 = vmatpush1.msra.mxu0 %v408
    %968 = vmatprep.subr.mxu0 %v412
    %969 = vmatpush1.msra.mxu0 %v411
    %970 = vmatprep.subr.mxu0 %v415
    %971 = vmatpush1.msra.mxu0 %v414
    %972 = vmatprep.subr.mxu0 %v418
    %973 = vmatpush1.msra.mxu0 %v417
    %974 = vmatprep.subr.mxu0 %v421
    %975 = vmatpush1.msra.mxu0 %v420
    %976 = vmatprep.subr.mxu0 %v424
    %977 = vmatpush1.msra.mxu0 %v423
    %978 = vmatprep.subr.mxu0 %v427
    %979 = vmatpush1.msra.mxu0 %v426
    %980 = vmatprep.subr.mxu0 %v430
    %981 = vmatpush1.msra.mxu0 %v429
    %982 = vmatprep.subr.mxu0 %v433
    %983 = vmatpush1.msra.mxu0 %v432
    %984 = vmatprep.subr.mxu0 %v436
    %985 = vmatpush1.msra.mxu0 %v435
    %986 = vmatprep.subr.mxu0 %v439
    %987 = vmatpush1.msra.mxu0 %v438
    %988 = vmatprep.subr.mxu0 %v442
    %989 = vmatpush1.msra.mxu0 %v441
    %990 = vmatprep.subr.mxu0 %v445
    %991 = vmatpush1.msra.mxu0 %v444
    %992 = vmatprep.subr.mxu0 %v448
    %993 = vmatpush1.msra.mxu0 %v447
    %994 = vmatprep.subr.mxu0 0.0
    %995 = vmatpush1.msra.mxu0 0.0
    %996 = vmatprep.subr.mxu0 0.0
    %997 = vmatpush1.msra.mxu0 0.0
    %998 = vmatprep.subr.mxu0 0.0
    %999 = vmatpush1.msra.mxu0 0.0
    %1000 = vmatprep.subr.mxu0 0.0
    %1001 = vmatpush1.msra.mxu0 0.0
    %1002 = vmatprep.subr.mxu0 0.0
    %1003 = vmatpush1.msra.mxu0 0.0
    %1004 = vmatprep.subr.mxu0 0.0
    %1005 = vmatpush1.msra.mxu0 0.0
    %1006 = vmatprep.subr.mxu0 0.0
    %1007 = vmatpush1.msra.mxu0 0.0
    %1008 = vmatprep.subr.mxu0 0.0
    %1009 = vmatpush1.msra.mxu0 0.0
    %1010 = vmatprep.subr.mxu0 0.0
    %1011 = vmatpush1.msra.mxu0 0.0
    %1012 = vmatprep.subr.mxu0 0.0
    %1013 = vmatpush1.msra.mxu0 0.0
    %1014 = vmatprep.subr.mxu0 0.0
    %1015 = vmatpush1.msra.mxu0 0.0
    %1016 = vmatprep.subr.mxu0 0.0
    %1017 = vmatpush1.msra.mxu0 0.0
    %1018 = vmatprep.subr.mxu0 0.0
    %1019 = vmatpush1.msra.mxu0 0.0
    %1020 = vmatprep.subr.mxu0 0.0
    %1021 = vmatpush1.msra.mxu0 0.0
    %1022 = vmatprep.subr.mxu0 0.0
    %1023 = vmatpush1.msra.mxu0 0.0
    %1024 = vmatprep.subr.mxu0 0.0
    %1025 = vmatpush1.msra.mxu0 0.0
    %1026 = vmatprep.mubr.f32.mxu0 0.0
    %1027 = vmatmul.mubr.f32.gmra.mrb[0].mxu0 %v957
    %v1028 = vpop.f32.mrb[0].mxu0
    %v1029 = vadd.f32 0.0, %v1028
    %v1030 = vpop.f32.mrb[0].mxu0
    %v1031 = vadd.f32 0.0, %v1030
    %1032 = vdwg.mxu0
    %1033 = vmatprep.subr.mxu0 0.0
    %1034 = vmatpush1.msra.mxu0 %v404
    %1035 = vmatprep.subr.mxu0 0.0
    %1036 = vmatpush1.msra.mxu0 %v407
    %1037 = vmatprep.subr.mxu0 0.0
    %1038 = vmatpush1.msra.mxu0 %v410
    %1039 = vmatprep.subr.mxu0 0.0
    %1040 = vmatpush1.msra.mxu0 %v413
    %1041 = vmatprep.subr.mxu0 0.0
    %1042 = vmatpush1.msra.mxu0 %v416
    %1043 = vmatprep.subr.mxu0 0.0
    %1044 = vmatpush1.msra.mxu0 %v419
    %1045 = vmatprep.subr.mxu0 0.0
    %1046 = vmatpush1.msra.mxu0 %v422
    %1047 = vmatprep.subr.mxu0 0.0
    %1048 = vmatpush1.msra.mxu0 %v425
    %1049 = vmatprep.subr.mxu0 0.0
    %1050 = vmatpush1.msra.mxu0 %v428
    %1051 = vmatprep.subr.mxu0 0.0
    %1052 = vmatpush1.msra.mxu0 %v431
    %1053 = vmatprep.subr.mxu0 0.0
    %1054 = vmatpush1.msra.mxu0 %v434
    %1055 = vmatprep.subr.mxu0 0.0
    %1056 = vmatpush1.msra.mxu0 %v437
    %1057 = vmatprep.subr.mxu0 0.0
    %1058 = vmatpush1.msra.mxu0 %v440
    %1059 = vmatprep.subr.mxu0 0.0
    %1060 = vmatpush1.msra.mxu0 %v443
    %1061 = vmatprep.subr.mxu0 0.0
    %1062 = vmatpush1.msra.mxu0 %v446
    %1063 = vmatprep.subr.mxu0 0.0
    %1064 = vmatpush1.msra.mxu0 %v449
    %1065 = vmatprep.subr.mxu0 0.0
    %1066 = vmatpush1.msra.mxu0 0.0
    %1067 = vmatprep.subr.mxu0 0.0
    %1068 = vmatpush1.msra.mxu0 0.0
    %1069 = vmatprep.subr.mxu0 0.0
    %1070 = vmatpush1.msra.mxu0 0.0
    %1071 = vmatprep.subr.mxu0 0.0
    %1072 = vmatpush1.msra.mxu0 0.0
    %1073 = vmatprep.subr.mxu0 0.0
    %1074 = vmatpush1.msra.mxu0 0.0
    %1075 = vmatprep.subr.mxu0 0.0
    %1076 = vmatpush1.msra.mxu0 0.0
    %1077 = vmatprep.subr.mxu0 0.0
    %1078 = vmatpush1.msra.mxu0 0.0
    %1079 = vmatprep.subr.mxu0 0.0
    %1080 = vmatpush1.msra.mxu0 0.0
    %1081 = vmatprep.subr.mxu0 0.0
    %1082 = vmatpush1.msra.mxu0 0.0
    %1083 = vmatprep.subr.mxu0 0.0
    %1084 = vmatpush1.msra.mxu0 0.0
    %1085 = vmatprep.subr.mxu0 0.0
    %1086 = vmatpush1.msra.mxu0 0.0
    %1087 = vmatprep.subr.mxu0 0.0
    %1088 = vmatpush1.msra.mxu0 0.0
    %1089 = vmatprep.subr.mxu0 0.0
    %1090 = vmatpush1.msra.mxu0 0.0
    %1091 = vmatprep.subr.mxu0 0.0
    %1092 = vmatpush1.msra.mxu0 0.0
    %1093 = vmatprep.subr.mxu0 0.0
    %1094 = vmatpush1.msra.mxu0 0.0
    %1095 = vmatprep.subr.mxu0 0.0
    %1096 = vmatpush1.msra.mxu0 0.0
    %1097 = vmatprep.mubr.f32.mxu0 0.0
    %1098 = vmatmul.mubr.f32.gmra.mrb[0].mxu0 %v957
    %v1099 = vpop.f32.mrb[0].mxu0
    %v1100 = vadd.f32 0.0, %v1099
    %v1101 = vpop.f32.mrb[0].mxu0
    %1102 = vdwg.mxu0
    %v1103 = vadd.f32 %v959, %v1029
    %v1104 = vxor.u32 %v1103, 2147483648
    %v1105 = vmul.f32 %v1104, 1.442695
    %v1106 = vpow.pop %v1105
    %v1107 = vadd.f32 %v1106, 1.0
    %v1108 = vrcp.pop %v1107
    %v1109 = vmul.f32 1.0, %v1108
    %v1110 = vadd.f32 %v960, %v1031
    %v1111 = vxor.u32 %v1110, 2147483648
    %v1112 = vmul.f32 %v1111, 1.442695
    %v1113 = vpow.pop %v1112
    %v1114 = vadd.f32 %v1113, 1.0
    %v1115 = vrcp.pop %v1114
    %v1116 = vmul.f32 1.0, %v1115
    %v1117 = vadd.f32 %v1100, %v455
    %v1118 = vmul.f32 %v1109, %v1117
    %v1119 = vadd.f32 %v961, %v1118
    %v1120 = vtanh.pop %v1119
    %v1121 = vsub.f32 1.0, %v1116
    %v1122 = vmul.f32 %v1121, %v1120
    %v1123 = vmul.f32 %v1116, %v957
    %v1124 = vadd.f32 %v1122, %v1123
    %s1125 = scalar_lea.vmem [#allocation3], 96
    %v1126 = vld [vmem:[%s1125] sm:$0xff]
    %v1127 = vld [vmem:[%s1125 + $0x8] sm:$0xff]
    %v1128 = vld [vmem:[%s1125 + $0x10] sm:$0xff]
    %1129 = vmatprep.subr.mxu0 %v403
    %1130 = vmatpush1.msra.mxu0 %v402
    %1131 = vmatprep.subr.mxu0 %v406
    %1132 = vmatpush1.msra.mxu0 %v405
    %1133 = vmatprep.subr.mxu0 %v409
    %1134 = vmatpush1.msra.mxu0 %v408
    %1135 = vmatprep.subr.mxu0 %v412
    %1136 = vmatpush1.msra.mxu0 %v411
    %1137 = vmatprep.subr.mxu0 %v415
    %1138 = vmatpush1.msra.mxu0 %v414
    %1139 = vmatprep.subr.mxu0 %v418
    %1140 = vmatpush1.msra.mxu0 %v417
    %1141 = vmatprep.subr.mxu0 %v421
    %1142 = vmatpush1.msra.mxu0 %v420
    %1143 = vmatprep.subr.mxu0 %v424
    %1144 = vmatpush1.msra.mxu0 %v423
    %1145 = vmatprep.subr.mxu0 %v427
    %1146 = vmatpush1.msra.mxu0 %v426
    %1147 = vmatprep.subr.mxu0 %v430
    %1148 = vmatpush1.msra.mxu0 %v429
    %1149 = vmatprep.subr.mxu0 %v433
    %1150 = vmatpush1.msra.mxu0 %v432
    %1151 = vmatprep.subr.mxu0 %v436
    %1152 = vmatpush1.msra.mxu0 %v435
    %1153 = vmatprep.subr.mxu0 %v439
    %1154 = vmatpush1.msra.mxu0 %v438
    %1155 = vmatprep.subr.mxu0 %v442
    %1156 = vmatpush1.msra.mxu0 %v441
    %1157 = vmatprep.subr.mxu0 %v445
    %1158 = vmatpush1.msra.mxu0 %v444
    %1159 = vmatprep.subr.mxu0 %v448
    %1160 = vmatpush1.msra.mxu0 %v447
    %1161 = vmatprep.subr.mxu0 0.0
    %1162 = vmatpush1.msra.mxu0 0.0
    %1163 = vmatprep.subr.mxu0 0.0
    %1164 = vmatpush1.msra.mxu0 0.0
    %1165 = vmatprep.subr.mxu0 0.0
    %1166 = vmatpush1.msra.mxu0 0.0
    %1167 = vmatprep.subr.mxu0 0.0
    %1168 = vmatpush1.msra.mxu0 0.0
    %1169 = vmatprep.subr.mxu0 0.0
    %1170 = vmatpush1.msra.mxu0 0.0
    %1171 = vmatprep.subr.mxu0 0.0
    %1172 = vmatpush1.msra.mxu0 0.0
    %1173 = vmatprep.subr.mxu0 0.0
    %1174 = vmatpush1.msra.mxu0 0.0
    %1175 = vmatprep.subr.mxu0 0.0
    %1176 = vmatpush1.msra.mxu0 0.0
    %1177 = vmatprep.subr.mxu0 0.0
    %1178 = vmatpush1.msra.mxu0 0.0
    %1179 = vmatprep.subr.mxu0 0.0
    %1180 = vmatpush1.msra.mxu0 0.0
    %1181 = vmatprep.subr.mxu0 0.0
    %1182 = vmatpush1.msra.mxu0 0.0
    %1183 = vmatprep.subr.mxu0 0.0
    %1184 = vmatpush1.msra.mxu0 0.0
    %1185 = vmatprep.subr.mxu0 0.0
    %1186 = vmatpush1.msra.mxu0 0.0
    %1187 = vmatprep.subr.mxu0 0.0
    %1188 = vmatpush1.msra.mxu0 0.0
    %1189 = vmatprep.subr.mxu0 0.0
    %1190 = vmatpush1.msra.mxu0 0.0
    %1191 = vmatprep.subr.mxu0 0.0
    %1192 = vmatpush1.msra.mxu0 0.0
    %1193 = vmatprep.mubr.f32.mxu0 0.0
    %1194 = vmatmul.mubr.f32.gmra.mrb[0].mxu0 %v1124
    %v1195 = vpop.f32.mrb[0].mxu0
    %v1196 = vadd.f32 0.0, %v1195
    %v1197 = vpop.f32.mrb[0].mxu0
    %v1198 = vadd.f32 0.0, %v1197
    %1199 = vdwg.mxu0
    %1200 = vmatprep.subr.mxu0 0.0
    %1201 = vmatpush1.msra.mxu0 %v404
    %1202 = vmatprep.subr.mxu0 0.0
    %1203 = vmatpush1.msra.mxu0 %v407
    %1204 = vmatprep.subr.mxu0 0.0
    %1205 = vmatpush1.msra.mxu0 %v410
    %1206 = vmatprep.subr.mxu0 0.0
    %1207 = vmatpush1.msra.mxu0 %v413
    %1208 = vmatprep.subr.mxu0 0.0
    %1209 = vmatpush1.msra.mxu0 %v416
    %1210 = vmatprep.subr.mxu0 0.0
    %1211 = vmatpush1.msra.mxu0 %v419
    %1212 = vmatprep.subr.mxu0 0.0
    %1213 = vmatpush1.msra.mxu0 %v422
    %1214 = vmatprep.subr.mxu0 0.0
    %1215 = vmatpush1.msra.mxu0 %v425
    %1216 = vmatprep.subr.mxu0 0.0
    %1217 = vmatpush1.msra.mxu0 %v428
    %1218 = vmatprep.subr.mxu0 0.0
    %1219 = vmatpush1.msra.mxu0 %v431
    %1220 = vmatprep.subr.mxu0 0.0
    %1221 = vmatpush1.msra.mxu0 %v434
    %1222 = vmatprep.subr.mxu0 0.0
    %1223 = vmatpush1.msra.mxu0 %v437
    %1224 = vmatprep.subr.mxu0 0.0
    %1225 = vmatpush1.msra.mxu0 %v440
    %1226 = vmatprep.subr.mxu0 0.0
    %1227 = vmatpush1.msra.mxu0 %v443
    %1228 = vmatprep.subr.mxu0 0.0
    %1229 = vmatpush1.msra.mxu0 %v446
    %1230 = vmatprep.subr.mxu0 0.0
    %1231 = vmatpush1.msra.mxu0 %v449
    %1232 = vmatprep.subr.mxu0 0.0
    %1233 = vmatpush1.msra.mxu0 0.0
    %1234 = vmatprep.subr.mxu0 0.0
    %1235 = vmatpush1.msra.mxu0 0.0
    %1236 = vmatprep.subr.mxu0 0.0
    %1237 = vmatpush1.msra.mxu0 0.0
    %1238 = vmatprep.subr.mxu0 0.0
    %1239 = vmatpush1.msra.mxu0 0.0
    %1240 = vmatprep.subr.mxu0 0.0
    %1241 = vmatpush1.msra.mxu0 0.0
    %1242 = vmatprep.subr.mxu0 0.0
    %1243 = vmatpush1.msra.mxu0 0.0
    %1244 = vmatprep.subr.mxu0 0.0
    %1245 = vmatpush1.msra.mxu0 0.0
    %1246 = vmatprep.subr.mxu0 0.0
    %1247 = vmatpush1.msra.mxu0 0.0
    %1248 = vmatprep.subr.mxu0 0.0
    %1249 = vmatpush1.msra.mxu0 0.0
    %1250 = vmatprep.subr.mxu0 0.0
    %1251 = vmatpush1.msra.mxu0 0.0
    %1252 = vmatprep.subr.mxu0 0.0
    %1253 = vmatpush1.msra.mxu0 0.0
    %1254 = vmatprep.subr.mxu0 0.0
    %1255 = vmatpush1.msra.mxu0 0.0
    %1256 = vmatprep.subr.mxu0 0.0
    %1257 = vmatpush1.msra.mxu0 0.0
    %1258 = vmatprep.subr.mxu0 0.0
    %1259 = vmatpush1.msra.mxu0 0.0
    %1260 = vmatprep.subr.mxu0 0.0
    %1261 = vmatpush1.msra.mxu0 0.0
    %1262 = vmatprep.subr.mxu0 0.0
    %1263 = vmatpush1.msra.mxu0 0.0
    %1264 = vmatprep.mubr.f32.mxu0 0.0
    %1265 = vmatmul.mubr.f32.gmra.mrb[0].mxu0 %v1124
    %v1266 = vpop.f32.mrb[0].mxu0
    %v1267 = vadd.f32 0.0, %v1266
    %v1268 = vpop.f32.mrb[0].mxu0
    %1269 = vdwg.mxu0
    %v1270 = vadd.f32 %v1126, %v1196
    %v1271 = vxor.u32 %v1270, 2147483648
    %v1272 = vmul.f32 %v1271, 1.442695
    %v1273 = vpow.pop %v1272
    %v1274 = vadd.f32 %v1273, 1.0
    %v1275 = vrcp.pop %v1274
    %v1276 = vmul.f32 1.0, %v1275
    %v1277 = vadd.f32 %v1127, %v1198
    %v1278 = vxor.u32 %v1277, 2147483648
    %v1279 = vmul.f32 %v1278, 1.442695
    %v1280 = vpow.pop %v1279
    %v1281 = vadd.f32 %v1280, 1.0
    %v1282 = vrcp.pop %v1281
    %v1283 = vmul.f32 1.0, %v1282
    %v1284 = vadd.f32 %v1267, %v455
    %v1285 = vmul.f32 %v1276, %v1284
    %v1286 = vadd.f32 %v1128, %v1285
    %v1287 = vtanh.pop %v1286
    %v1288 = vsub.f32 1.0, %v1283
    %v1289 = vmul.f32 %v1288, %v1287
    %v1290 = vmul.f32 %v1283, %v1124
    %v1291 = vadd.f32 %v1289, %v1290
    %s1292 = scalar_lea.vmem [#allocation3], 120
    %v1293 = vld [vmem:[%s1292] sm:$0xff]
    %v1294 = vld [vmem:[%s1292 + $0x8] sm:$0xff]
    %v1295 = vld [vmem:[%s1292 + $0x10] sm:$0xff]
    %1296 = vmatprep.subr.mxu0 %v403
    %1297 = vmatpush1.msra.mxu0 %v402
    %1298 = vmatprep.subr.mxu0 %v406
    %1299 = vmatpush1.msra.mxu0 %v405
    %1300 = vmatprep.subr.mxu0 %v409
    %1301 = vmatpush1.msra.mxu0 %v408
    %1302 = vmatprep.subr.mxu0 %v412
    %1303 = vmatpush1.msra.mxu0 %v411
    %1304 = vmatprep.subr.mxu0 %v415
    %1305 = vmatpush1.msra.mxu0 %v414
    %1306 = vmatprep.subr.mxu0 %v418
    %1307 = vmatpush1.msra.mxu0 %v417
    %1308 = vmatprep.subr.mxu0 %v421
    %1309 = vmatpush1.msra.mxu0 %v420
    %1310 = vmatprep.subr.mxu0 %v424
    %1311 = vmatpush1.msra.mxu0 %v423
    %1312 = vmatprep.subr.mxu0 %v427
    %1313 = vmatpush1.msra.mxu0 %v426
    %1314 = vmatprep.subr.mxu0 %v430
    %1315 = vmatpush1.msra.mxu0 %v429
    %1316 = vmatprep.subr.mxu0 %v433
    %1317 = vmatpush1.msra.mxu0 %v432
    %1318 = vmatprep.subr.mxu0 %v436
    %1319 = vmatpush1.msra.mxu0 %v435
    %1320 = vmatprep.subr.mxu0 %v439
    %1321 = vmatpush1.msra.mxu0 %v438
    %1322 = vmatprep.subr.mxu0 %v442
    %1323 = vmatpush1.msra.mxu0 %v441
    %1324 = vmatprep.subr.mxu0 %v445
    %1325 = vmatpush1.msra.mxu0 %v444
    %1326 = vmatprep.subr.mxu0 %v448
    %1327 = vmatpush1.msra.mxu0 %v447
    %1328 = vmatprep.subr.mxu0 0.0
    %1329 = vmatpush1.msra.mxu0 0.0
    %1330 = vmatprep.subr.mxu0 0.0
    %1331 = vmatpush1.msra.mxu0 0.0
    %1332 = vmatprep.subr.mxu0 0.0
    %1333 = vmatpush1.msra.mxu0 0.0
    %1334 = vmatprep.subr.mxu0 0.0
    %1335 = vmatpush1.msra.mxu0 0.0
    %1336 = vmatprep.subr.mxu0 0.0
    %1337 = vmatpush1.msra.mxu0 0.0
    %1338 = vmatprep.subr.mxu0 0.0
    %1339 = vmatpush1.msra.mxu0 0.0
    %1340 = vmatprep.subr.mxu0 0.0
    %1341 = vmatpush1.msra.mxu0 0.0
    %1342 = vmatprep.subr.mxu0 0.0
    %1343 = vmatpush1.msra.mxu0 0.0
    %1344 = vmatprep.subr.mxu0 0.0
    %1345 = vmatpush1.msra.mxu0 0.0
    %1346 = vmatprep.subr.mxu0 0.0
    %1347 = vmatpush1.msra.mxu0 0.0
    %1348 = vmatprep.subr.mxu0 0.0
    %1349 = vmatpush1.msra.mxu0 0.0
    %1350 = vmatprep.subr.mxu0 0.0
    %1351 = vmatpush1.msra.mxu0 0.0
    %1352 = vmatprep.subr.mxu0 0.0
    %1353 = vmatpush1.msra.mxu0 0.0
    %1354 = vmatprep.subr.mxu0 0.0
    %1355 = vmatpush1.msra.mxu0 0.0
    %1356 = vmatprep.subr.mxu0 0.0
    %1357 = vmatpush1.msra.mxu0 0.0
    %1358 = vmatprep.subr.mxu0 0.0
    %1359 = vmatpush1.msra.mxu0 0.0
    %1360 = vmatprep.mubr.f32.mxu0 0.0
    %1361 = vmatmul.mubr.f32.gmra.mrb[0].mxu0 %v1291
    %v1362 = vpop.f32.mrb[0].mxu0
    %v1363 = vadd.f32 0.0, %v1362
    %v1364 = vpop.f32.mrb[0].mxu0
    %v1365 = vadd.f32 0.0, %v1364
    %1366 = vdwg.mxu0
    %1367 = vmatprep.subr.mxu0 0.0
    %1368 = vmatpush1.msra.mxu0 %v404
    %1369 = vmatprep.subr.mxu0 0.0
    %1370 = vmatpush1.msra.mxu0 %v407
    %1371 = vmatprep.subr.mxu0 0.0
    %1372 = vmatpush1.msra.mxu0 %v410
    %1373 = vmatprep.subr.mxu0 0.0
    %1374 = vmatpush1.msra.mxu0 %v413
    %1375 = vmatprep.subr.mxu0 0.0
    %1376 = vmatpush1.msra.mxu0 %v416
    %1377 = vmatprep.subr.mxu0 0.0
    %1378 = vmatpush1.msra.mxu0 %v419
    %1379 = vmatprep.subr.mxu0 0.0
    %1380 = vmatpush1.msra.mxu0 %v422
    %1381 = vmatprep.subr.mxu0 0.0
    %1382 = vmatpush1.msra.mxu0 %v425
    %1383 = vmatprep.subr.mxu0 0.0
    %1384 = vmatpush1.msra.mxu0 %v428
    %1385 = vmatprep.subr.mxu0 0.0
    %1386 = vmatpush1.msra.mxu0 %v431
    %1387 = vmatprep.subr.mxu0 0.0
    %1388 = vmatpush1.msra.mxu0 %v434
    %1389 = vmatprep.subr.mxu0 0.0
    %1390 = vmatpush1.msra.mxu0 %v437
    %1391 = vmatprep.subr.mxu0 0.0
    %1392 = vmatpush1.msra.mxu0 %v440
    %1393 = vmatprep.subr.mxu0 0.0
    %1394 = vmatpush1.msra.mxu0 %v443
    %1395 = vmatprep.subr.mxu0 0.0
    %1396 = vmatpush1.msra.mxu0 %v446
    %1397 = vmatprep.subr.mxu0 0.0
    %1398 = vmatpush1.msra.mxu0 %v449
    %1399 = vmatprep.subr.mxu0 0.0
    %1400 = vmatpush1.msra.mxu0 0.0
    %1401 = vmatprep.subr.mxu0 0.0
    %1402 = vmatpush1.msra.mxu0 0.0
    %1403 = vmatprep.subr.mxu0 0.0
    %1404 = vmatpush1.msra.mxu0 0.0
    %1405 = vmatprep.subr.mxu0 0.0
    %1406 = vmatpush1.msra.mxu0 0.0
    %1407 = vmatprep.subr.mxu0 0.0
    %1408 = vmatpush1.msra.mxu0 0.0
    %1409 = vmatprep.subr.mxu0 0.0
    %1410 = vmatpush1.msra.mxu0 0.0
    %1411 = vmatprep.subr.mxu0 0.0
    %1412 = vmatpush1.msra.mxu0 0.0
    %1413 = vmatprep.subr.mxu0 0.0
    %1414 = vmatpush1.msra.mxu0 0.0
    %1415 = vmatprep.subr.mxu0 0.0
    %1416 = vmatpush1.msra.mxu0 0.0
    %1417 = vmatprep.subr.mxu0 0.0
    %1418 = vmatpush1.msra.mxu0 0.0
    %1419 = vmatprep.subr.mxu0 0.0
    %1420 = vmatpush1.msra.mxu0 0.0
    %1421 = vmatprep.subr.mxu0 0.0
    %1422 = vmatpush1.msra.mxu0 0.0
    %1423 = vmatprep.subr.mxu0 0.0
    %1424 = vmatpush1.msra.mxu0 0.0
    %1425 = vmatprep.subr.mxu0 0.0
    %1426 = vmatpush1.msra.mxu0 0.0
    %1427 = vmatprep.subr.mxu0 0.0
    %1428 = vmatpush1.msra.mxu0 0.0
    %1429 = vmatprep.subr.mxu0 0.0
    %1430 = vmatpush1.msra.mxu0 0.0
    %1431 = vmatprep.mubr.f32.mxu0 0.0
    %1432 = vmatmul.mubr.f32.gmra.mrb[0].mxu0 %v1291
    %v1433 = vpop.f32.mrb[0].mxu0
    %v1434 = vadd.f32 0.0, %v1433
    %v1435 = vpop.f32.mrb[0].mxu0
    %1436 = vdwg.mxu0
    %v1437 = vadd.f32 %v1293, %v1363
    %v1438 = vxor.u32 %v1437, 2147483648
    %v1439 = vmul.f32 %v1438, 1.442695
    %v1440 = vpow.pop %v1439
    %v1441 = vadd.f32 %v1440, 1.0
    %v1442 = vrcp.pop %v1441
    %v1443 = vmul.f32 1.0, %v1442
    %v1444 = vadd.f32 %v1294, %v1365
    %v1445 = vxor.u32 %v1444, 2147483648
    %v1446 = vmul.f32 %v1445, 1.442695
    %v1447 = vpow.pop %v1446
    %v1448 = vadd.f32 %v1447, 1.0
    %v1449 = vrcp.pop %v1448
    %v1450 = vmul.f32 1.0, %v1449
    %v1451 = vadd.f32 %v1434, %v455
    %v1452 = vmul.f32 %v1443, %v1451
    %v1453 = vadd.f32 %v1295, %v1452
    %v1454 = vtanh.pop %v1453
    %v1455 = vsub.f32 1.0, %v1450
    %v1456 = vmul.f32 %v1455, %v1454
    %v1457 = vmul.f32 %v1450, %v1291
    %v1458 = vadd.f32 %v1456, %v1457
    %s1459 = scalar_lea.vmem [#allocation3], 144
    %v1460 = vld [vmem:[%s1459] sm:$0xff]
    %v1461 = vld [vmem:[%s1459 + $0x8] sm:$0xff]
    %v1462 = vld [vmem:[%s1459 + $0x10] sm:$0xff]
    %1463 = vmatprep.subr.mxu0 %v403
    %1464 = vmatpush1.msra.mxu0 %v402
    %1465 = vmatprep.subr.mxu0 %v406
    %1466 = vmatpush1.msra.mxu0 %v405
    %1467 = vmatprep.subr.mxu0 %v409
    %1468 = vmatpush1.msra.mxu0 %v408
    %1469 = vmatprep.subr.mxu0 %v412
    %1470 = vmatpush1.msra.mxu0 %v411
    %1471 = vmatprep.subr.mxu0 %v415
    %1472 = vmatpush1.msra.mxu0 %v414
    %1473 = vmatprep.subr.mxu0 %v418
    %1474 = vmatpush1.msra.mxu0 %v417
    %1475 = vmatprep.subr.mxu0 %v421
    %1476 = vmatpush1.msra.mxu0 %v420
    %1477 = vmatprep.subr.mxu0 %v424
    %1478 = vmatpush1.msra.mxu0 %v423
    %1479 = vmatprep.subr.mxu0 %v427
    %1480 = vmatpush1.msra.mxu0 %v426
    %1481 = vmatprep.subr.mxu0 %v430
    %1482 = vmatpush1.msra.mxu0 %v429
    %1483 = vmatprep.subr.mxu0 %v433
    %1484 = vmatpush1.msra.mxu0 %v432
    %1485 = vmatprep.subr.mxu0 %v436
    %1486 = vmatpush1.msra.mxu0 %v435
    %1487 = vmatprep.subr.mxu0 %v439
    %1488 = vmatpush1.msra.mxu0 %v438
    %1489 = vmatprep.subr.mxu0 %v442
    %1490 = vmatpush1.msra.mxu0 %v441
    %1491 = vmatprep.subr.mxu0 %v445
    %1492 = vmatpush1.msra.mxu0 %v444
    %1493 = vmatprep.subr.mxu0 %v448
    %1494 = vmatpush1.msra.mxu0 %v447
    %1495 = vmatprep.subr.mxu0 0.0
    %1496 = vmatpush1.msra.mxu0 0.0
    %1497 = vmatprep.subr.mxu0 0.0
    %1498 = vmatpush1.msra.mxu0 0.0
    %1499 = vmatprep.subr.mxu0 0.0
    %1500 = vmatpush1.msra.mxu0 0.0
    %1501 = vmatprep.subr.mxu0 0.0
    %1502 = vmatpush1.msra.mxu0 0.0
    %1503 = vmatprep.subr.mxu0 0.0
    %1504 = vmatpush1.msra.mxu0 0.0
    %1505 = vmatprep.subr.mxu0 0.0
    %1506 = vmatpush1.msra.mxu0 0.0
    %1507 = vmatprep.subr.mxu0 0.0
    %1508 = vmatpush1.msra.mxu0 0.0
    %1509 = vmatprep.subr.mxu0 0.0
    %1510 = vmatpush1.msra.mxu0 0.0
    %1511 = vmatprep.subr.mxu0 0.0
    %1512 = vmatpush1.msra.mxu0 0.0
    %1513 = vmatprep.subr.mxu0 0.0
    %1514 = vmatpush1.msra.mxu0 0.0
    %1515 = vmatprep.subr.mxu0 0.0
    %1516 = vmatpush1.msra.mxu0 0.0
    %1517 = vmatprep.subr.mxu0 0.0
    %1518 = vmatpush1.msra.mxu0 0.0
    %1519 = vmatprep.subr.mxu0 0.0
    %1520 = vmatpush1.msra.mxu0 0.0
    %1521 = vmatprep.subr.mxu0 0.0
    %1522 = vmatpush1.msra.mxu0 0.0
    %1523 = vmatprep.subr.mxu0 0.0
    %1524 = vmatpush1.msra.mxu0 0.0
    %1525 = vmatprep.subr.mxu0 0.0
    %1526 = vmatpush1.msra.mxu0 0.0
    %1527 = vmatprep.mubr.f32.mxu0 0.0
    %1528 = vmatmul.mubr.f32.gmra.mrb[0].mxu0 %v1458
    %v1529 = vpop.f32.mrb[0].mxu0
    %v1530 = vadd.f32 0.0, %v1529
    %v1531 = vpop.f32.mrb[0].mxu0
    %v1532 = vadd.f32 0.0, %v1531
    %1533 = vdwg.mxu0
    %1534 = vmatprep.subr.mxu0 0.0
    %1535 = vmatpush1.msra.mxu0 %v404
    %1536 = vmatprep.subr.mxu0 0.0
    %1537 = vmatpush1.msra.mxu0 %v407
    %1538 = vmatprep.subr.mxu0 0.0
    %1539 = vmatpush1.msra.mxu0 %v410
    %1540 = vmatprep.subr.mxu0 0.0
    %1541 = vmatpush1.msra.mxu0 %v413
    %1542 = vmatprep.subr.mxu0 0.0
    %1543 = vmatpush1.msra.mxu0 %v416
    %1544 = vmatprep.subr.mxu0 0.0
    %1545 = vmatpush1.msra.mxu0 %v419
    %1546 = vmatprep.subr.mxu0 0.0
    %1547 = vmatpush1.msra.mxu0 %v422
    %1548 = vmatprep.subr.mxu0 0.0
    %1549 = vmatpush1.msra.mxu0 %v425
    %1550 = vmatprep.subr.mxu0 0.0
    %1551 = vmatpush1.msra.mxu0 %v428
    %1552 = vmatprep.subr.mxu0 0.0
    %1553 = vmatpush1.msra.mxu0 %v431
    %1554 = vmatprep.subr.mxu0 0.0
    %1555 = vmatpush1.msra.mxu0 %v434
    %1556 = vmatprep.subr.mxu0 0.0
    %1557 = vmatpush1.msra.mxu0 %v437
    %1558 = vmatprep.subr.mxu0 0.0
    %1559 = vmatpush1.msra.mxu0 %v440
    %1560 = vmatprep.subr.mxu0 0.0
    %1561 = vmatpush1.msra.mxu0 %v443
    %1562 = vmatprep.subr.mxu0 0.0
    %1563 = vmatpush1.msra.mxu0 %v446
    %1564 = vmatprep.subr.mxu0 0.0
    %1565 = vmatpush1.msra.mxu0 %v449
    %1566 = vmatprep.subr.mxu0 0.0
    %1567 = vmatpush1.msra.mxu0 0.0
    %1568 = vmatprep.subr.mxu0 0.0
    %1569 = vmatpush1.msra.mxu0 0.0
    %1570 = vmatprep.subr.mxu0 0.0
    %1571 = vmatpush1.msra.mxu0 0.0
    %1572 = vmatprep.subr.mxu0 0.0
    %1573 = vmatpush1.msra.mxu0 0.0
    %1574 = vmatprep.subr.mxu0 0.0
    %1575 = vmatpush1.msra.mxu0 0.0
    %1576 = vmatprep.subr.mxu0 0.0
    %1577 = vmatpush1.msra.mxu0 0.0
    %1578 = vmatprep.subr.mxu0 0.0
    %1579 = vmatpush1.msra.mxu0 0.0
    %1580 = vmatprep.subr.mxu0 0.0
    %1581 = vmatpush1.msra.mxu0 0.0
    %1582 = vmatprep.subr.mxu0 0.0
    %1583 = vmatpush1.msra.mxu0 0.0
    %1584 = vmatprep.subr.mxu0 0.0
    %1585 = vmatpush1.msra.mxu0 0.0
    %1586 = vmatprep.subr.mxu0 0.0
    %1587 = vmatpush1.msra.mxu0 0.0
    %1588 = vmatprep.subr.mxu0 0.0
    %1589 = vmatpush1.msra.mxu0 0.0
    %1590 = vmatprep.subr.mxu0 0.0
    %1591 = vmatpush1.msra.mxu0 0.0
    %1592 = vmatprep.subr.mxu0 0.0
    %1593 = vmatpush1.msra.mxu0 0.0
    %1594 = vmatprep.subr.mxu0 0.0
    %1595 = vmatpush1.msra.mxu0 0.0
    %1596 = vmatprep.subr.mxu0 0.0
    %1597 = vmatpush1.msra.mxu0 0.0
    %1598 = vmatprep.mubr.f32.mxu0 0.0
    %1599 = vmatmul.mubr.f32.gmra.mrb[0].mxu0 %v1458
    %v1600 = vpop.f32.mrb[0].mxu0
    %v1601 = vadd.f32 0.0, %v1600
    %v1602 = vpop.f32.mrb[0].mxu0
    %1603 = vdwg.mxu0
    %v1604 = vadd.f32 %v1460, %v1530
    %v1605 = vxor.u32 %v1604, 2147483648
    %v1606 = vmul.f32 %v1605, 1.442695
    %v1607 = vpow.pop %v1606
    %v1608 = vadd.f32 %v1607, 1.0
    %v1609 = vrcp.pop %v1608
    %v1610 = vmul.f32 1.0, %v1609
    %v1611 = vadd.f32 %v1461, %v1532
    %v1612 = vxor.u32 %v1611, 2147483648
    %v1613 = vmul.f32 %v1612, 1.442695
    %v1614 = vpow.pop %v1613
    %v1615 = vadd.f32 %v1614, 1.0
    %v1616 = vrcp.pop %v1615
    %v1617 = vmul.f32 1.0, %v1616
    %v1618 = vadd.f32 %v1601, %v455
    %v1619 = vmul.f32 %v1610, %v1618
    %v1620 = vadd.f32 %v1462, %v1619
    %v1621 = vtanh.pop %v1620
    %v1622 = vsub.f32 1.0, %v1617
    %v1623 = vmul.f32 %v1622, %v1621
    %v1624 = vmul.f32 %v1617, %v1458
    %v1625 = vadd.f32 %v1623, %v1624
    %s1626 = scalar_lea.vmem [#allocation3], 168
    %v1627 = vld [vmem:[%s1626] sm:$0xff]
    %v1628 = vld [vmem:[%s1626 + $0x8] sm:$0xff]
    %v1629 = vld [vmem:[%s1626 + $0x10] sm:$0xff]
    %1630 = vmatprep.subr.mxu0 %v403
    %1631 = vmatpush1.msra.mxu0 %v402
    %1632 = vmatprep.subr.mxu0 %v406
    %1633 = vmatpush1.msra.mxu0 %v405
    %1634 = vmatprep.subr.mxu0 %v409
    %1635 = vmatpush1.msra.mxu0 %v408
    %1636 = vmatprep.subr.mxu0 %v412
    %1637 = vmatpush1.msra.mxu0 %v411
    %1638 = vmatprep.subr.mxu0 %v415
    %1639 = vmatpush1.msra.mxu0 %v414
    %1640 = vmatprep.subr.mxu0 %v418
    %1641 = vmatpush1.msra.mxu0 %v417
    %1642 = vmatprep.subr.mxu0 %v421
    %1643 = vmatpush1.msra.mxu0 %v420
    %1644 = vmatprep.subr.mxu0 %v424
    %1645 = vmatpush1.msra.mxu0 %v423
    %1646 = vmatprep.subr.mxu0 %v427
    %1647 = vmatpush1.msra.mxu0 %v426
    %1648 = vmatprep.subr.mxu0 %v430
    %1649 = vmatpush1.msra.mxu0 %v429
    %1650 = vmatprep.subr.mxu0 %v433
    %1651 = vmatpush1.msra.mxu0 %v432
    %1652 = vmatprep.subr.mxu0 %v436
    %1653 = vmatpush1.msra.mxu0 %v435
    %1654 = vmatprep.subr.mxu0 %v439
    %1655 = vmatpush1.msra.mxu0 %v438
    %1656 = vmatprep.subr.mxu0 %v442
    %1657 = vmatpush1.msra.mxu0 %v441
    %1658 = vmatprep.subr.mxu0 %v445
    %1659 = vmatpush1.msra.mxu0 %v444
    %1660 = vmatprep.subr.mxu0 %v448
    %1661 = vmatpush1.msra.mxu0 %v447
    %1662 = vmatprep.subr.mxu0 0.0
    %1663 = vmatpush1.msra.mxu0 0.0
    %1664 = vmatprep.subr.mxu0 0.0
    %1665 = vmatpush1.msra.mxu0 0.0
    %1666 = vmatprep.subr.mxu0 0.0
    %1667 = vmatpush1.msra.mxu0 0.0
    %1668 = vmatprep.subr.mxu0 0.0
    %1669 = vmatpush1.msra.mxu0 0.0
    %1670 = vmatprep.subr.mxu0 0.0
    %1671 = vmatpush1.msra.mxu0 0.0
    %1672 = vmatprep.subr.mxu0 0.0
    %1673 = vmatpush1.msra.mxu0 0.0
    %1674 = vmatprep.subr.mxu0 0.0
    %1675 = vmatpush1.msra.mxu0 0.0
    %1676 = vmatprep.subr.mxu0 0.0
    %1677 = vmatpush1.msra.mxu0 0.0
    %1678 = vmatprep.subr.mxu0 0.0
    %1679 = vmatpush1.msra.mxu0 0.0
    %1680 = vmatprep.subr.mxu0 0.0
    %1681 = vmatpush1.msra.mxu0 0.0
    %1682 = vmatprep.subr.mxu0 0.0
    %1683 = vmatpush1.msra.mxu0 0.0
    %1684 = vmatprep.subr.mxu0 0.0
    %1685 = vmatpush1.msra.mxu0 0.0
    %1686 = vmatprep.subr.mxu0 0.0
    %1687 = vmatpush1.msra.mxu0 0.0
    %1688 = vmatprep.subr.mxu0 0.0
    %1689 = vmatpush1.msra.mxu0 0.0
    %1690 = vmatprep.subr.mxu0 0.0
    %1691 = vmatpush1.msra.mxu0 0.0
    %1692 = vmatprep.subr.mxu0 0.0
    %1693 = vmatpush1.msra.mxu0 0.0
    %1694 = vmatprep.mubr.f32.mxu0 0.0
    %1695 = vmatmul.mubr.f32.gmra.mrb[0].mxu0 %v1625
    %v1696 = vpop.f32.mrb[0].mxu0
    %v1697 = vadd.f32 0.0, %v1696
    %v1698 = vpop.f32.mrb[0].mxu0
    %v1699 = vadd.f32 0.0, %v1698
    %1700 = vdwg.mxu0
    %1701 = vmatprep.subr.mxu0 0.0
    %1702 = vmatpush1.msra.mxu0 %v404
    %1703 = vmatprep.subr.mxu0 0.0
    %1704 = vmatpush1.msra.mxu0 %v407
    %1705 = vmatprep.subr.mxu0 0.0
    %1706 = vmatpush1.msra.mxu0 %v410
    %1707 = vmatprep.subr.mxu0 0.0
    %1708 = vmatpush1.msra.mxu0 %v413
    %1709 = vmatprep.subr.mxu0 0.0
    %1710 = vmatpush1.msra.mxu0 %v416
    %1711 = vmatprep.subr.mxu0 0.0
    %1712 = vmatpush1.msra.mxu0 %v419
    %1713 = vmatprep.subr.mxu0 0.0
    %1714 = vmatpush1.msra.mxu0 %v422
    %1715 = vmatprep.subr.mxu0 0.0
    %1716 = vmatpush1.msra.mxu0 %v425
    %1717 = vmatprep.subr.mxu0 0.0
    %1718 = vmatpush1.msra.mxu0 %v428
    %1719 = vmatprep.subr.mxu0 0.0
    %1720 = vmatpush1.msra.mxu0 %v431
    %1721 = vmatprep.subr.mxu0 0.0
    %1722 = vmatpush1.msra.mxu0 %v434
    %1723 = vmatprep.subr.mxu0 0.0
    %1724 = vmatpush1.msra.mxu0 %v437
    %1725 = vmatprep.subr.mxu0 0.0
    %1726 = vmatpush1.msra.mxu0 %v440
    %1727 = vmatprep.subr.mxu0 0.0
    %1728 = vmatpush1.msra.mxu0 %v443
    %1729 = vmatprep.subr.mxu0 0.0
    %1730 = vmatpush1.msra.mxu0 %v446
    %1731 = vmatprep.subr.mxu0 0.0
    %1732 = vmatpush1.msra.mxu0 %v449
    %1733 = vmatprep.subr.mxu0 0.0
    %1734 = vmatpush1.msra.mxu0 0.0
    %1735 = vmatprep.subr.mxu0 0.0
    %1736 = vmatpush1.msra.mxu0 0.0
    %1737 = vmatprep.subr.mxu0 0.0
    %1738 = vmatpush1.msra.mxu0 0.0
    %1739 = vmatprep.subr.mxu0 0.0
    %1740 = vmatpush1.msra.mxu0 0.0
    %1741 = vmatprep.subr.mxu0 0.0
    %1742 = vmatpush1.msra.mxu0 0.0
    %1743 = vmatprep.subr.mxu0 0.0
    %1744 = vmatpush1.msra.mxu0 0.0
    %1745 = vmatprep.subr.mxu0 0.0
    %1746 = vmatpush1.msra.mxu0 0.0
    %1747 = vmatprep.subr.mxu0 0.0
    %1748 = vmatpush1.msra.mxu0 0.0
    %1749 = vmatprep.subr.mxu0 0.0
    %1750 = vmatpush1.msra.mxu0 0.0
    %1751 = vmatprep.subr.mxu0 0.0
    %1752 = vmatpush1.msra.mxu0 0.0
    %1753 = vmatprep.subr.mxu0 0.0
    %1754 = vmatpush1.msra.mxu0 0.0
    %1755 = vmatprep.subr.mxu0 0.0
    %1756 = vmatpush1.msra.mxu0 0.0
    %1757 = vmatprep.subr.mxu0 0.0
    %1758 = vmatpush1.msra.mxu0 0.0
    %1759 = vmatprep.subr.mxu0 0.0
    %1760 = vmatpush1.msra.mxu0 0.0
    %1761 = vmatprep.subr.mxu0 0.0
    %1762 = vmatpush1.msra.mxu0 0.0
    %1763 = vmatprep.subr.mxu0 0.0
    %1764 = vmatpush1.msra.mxu0 0.0
    %1765 = vmatprep.mubr.f32.mxu0 0.0
    %1766 = vmatmul.mubr.f32.gmra.mrb[0].mxu0 %v1625
    %v1767 = vpop.f32.mrb[0].mxu0
    %v1768 = vadd.f32 0.0, %v1767
    %v1769 = vpop.f32.mrb[0].mxu0
    %1770 = vdwg.mxu0
    %v1771 = vadd.f32 %v1627, %v1697
    %v1772 = vxor.u32 %v1771, 2147483648
    %v1773 = vmul.f32 %v1772, 1.442695
    %v1774 = vpow.pop %v1773
    %v1775 = vadd.f32 %v1774, 1.0
    %v1776 = vrcp.pop %v1775
    %v1777 = vmul.f32 1.0, %v1776
    %v1778 = vadd.f32 %v1628, %v1699
    %v1779 = vxor.u32 %v1778, 2147483648
    %v1780 = vmul.f32 %v1779, 1.442695
    %v1781 = vpow.pop %v1780
    %v1782 = vadd.f32 %v1781, 1.0
    %v1783 = vrcp.pop %v1782
    %v1784 = vmul.f32 1.0, %v1783
    %v1785 = vadd.f32 %v1768, %v455
    %v1786 = vmul.f32 %v1777, %v1785
    %v1787 = vadd.f32 %v1629, %v1786
    %v1788 = vtanh.pop %v1787
    %v1789 = vsub.f32 1.0, %v1784
    %v1790 = vmul.f32 %v1789, %v1788
    %v1791 = vmul.f32 %v1784, %v1625
    %v1792 = vadd.f32 %v1790, %v1791
    %1793 = vst [vmem:[#allocation2] sm:$0xff] %v1792
    // Predicated region
    $region50: #{tpu_custom_call.1} parent=1 // pred_check
      %p1794 = pneg %p82
    $region51: #{tpu_custom_call.1} parent=1 // pred_check_branch
      %1796 = sbr.rel (%p1794) target = $region53
    $region52: #{tpu_custom_call.1} parent=1 // pred_region
      %v1797 = vld [vmem:[#allocation10] sm:$0xff]
      %v1798 = vld [vmem:[#allocation10 + $0x8] sm:$0xff]
      %v1799 = vld [vmem:[#allocation10 + $0x10] sm:$0xff]
      %v1800 = vld [vmem:[#allocation10 + $0x18] sm:$0xff]
      %v1801 = vld [vmem:[#allocation10 + $0x20] sm:$0xff]
      %v1802 = vld [vmem:[#allocation10 + $0x28] sm:$0xff]
      %v1803 = vld [vmem:[#allocation10 + $0x30] sm:$0xff]
      %v1804 = vld [vmem:[#allocation10 + $0x38] sm:$0xff]
      %v1805 = vld [vmem:[#allocation10 + $0x40] sm:$0xff]
      %v1806 = vld [vmem:[#allocation10 + $0x48] sm:$0xff]
      %v1807 = vld [vmem:[#allocation10 + $0x50] sm:$0xff]
      %v1808 = vld [vmem:[#allocation10 + $0x58] sm:$0xff]
      %v1809 = vld [vmem:[#allocation10 + $0x60] sm:$0xff]
      %v1810 = vld [vmem:[#allocation10 + $0x68] sm:$0xff]
      %v1811 = vld [vmem:[#allocation10 + $0x70] sm:$0xff]
      %v1812 = vld [vmem:[#allocation10 + $0x78] sm:$0xff]
      %v1813 = vld [vmem:[%s6] sm:$0x1]
      %v1815 = vlaneseq
      %v1816 = vshrl.u32 %v1815, 7
      %v1817 = vsub.s32 0, %v1816
      %v1818 = vrot.slane %v1813, %v1817
      %1820 = vmatprep.subr.mxu0 0.0
      %1821 = vmatpush1.msra.mxu0 %v1797
      %1822 = vmatprep.subr.mxu0 0.0
      %1823 = vmatpush1.msra.mxu0 %v1798
      %1824 = vmatprep.subr.mxu0 0.0
      %1825 = vmatpush1.msra.mxu0 %v1799
      %1826 = vmatprep.subr.mxu0 0.0
      %1827 = vmatpush1.msra.mxu0 %v1800
      %1828 = vmatprep.subr.mxu0 0.0
      %1829 = vmatpush1.msra.mxu0 %v1801
      %1830 = vmatprep.subr.mxu0 0.0
      %1831 = vmatpush1.msra.mxu0 %v1802
      %1832 = vmatprep.subr.mxu0 0.0
      %1833 = vmatpush1.msra.mxu0 %v1803
      %1834 = vmatprep.subr.mxu0 0.0
      %1835 = vmatpush1.msra.mxu0 %v1804
      %1836 = vmatprep.subr.mxu0 0.0
      %1837 = vmatpush1.msra.mxu0 %v1805
      %1838 = vmatprep.subr.mxu0 0.0
      %1839 = vmatpush1.msra.mxu0 %v1806
      %1840 = vmatprep.subr.mxu0 0.0
      %1841 = vmatpush1.msra.mxu0 %v1807
      %1842 = vmatprep.subr.mxu0 0.0
      %1843 = vmatpush1.msra.mxu0 %v1808
      %1844 = vmatprep.subr.mxu0 0.0
      %1845 = vmatpush1.msra.mxu0 %v1809
      %1846 = vmatprep.subr.mxu0 0.0
      %1847 = vmatpush1.msra.mxu0 %v1810
      %1848 = vmatprep.subr.mxu0 0.0
      %1849 = vmatpush1.msra.mxu0 %v1811
      %1850 = vmatprep.subr.mxu0 0.0
      %1851 = vmatpush1.msra.mxu0 %v1812
      %1852 = vmatprep.subr.mxu0 0.0
      %1853 = vmatpush1.msra.mxu0 0.0
      %1854 = vmatprep.subr.mxu0 0.0
      %1855 = vmatpush1.msra.mxu0 0.0
      %1856 = vmatprep.subr.mxu0 0.0
      %1857 = vmatpush1.msra.mxu0 0.0
      %1858 = vmatprep.subr.mxu0 0.0
      %1859 = vmatpush1.msra.mxu0 0.0
      %1860 = vmatprep.subr.mxu0 0.0
      %1861 = vmatpush1.msra.mxu0 0.0
      %1862 = vmatprep.subr.mxu0 0.0
      %1863 = vmatpush1.msra.mxu0 0.0
      %1864 = vmatprep.subr.mxu0 0.0
      %1865 = vmatpush1.msra.mxu0 0.0
      %1866 = vmatprep.subr.mxu0 0.0
      %1867 = vmatpush1.msra.mxu0 0.0
      %1868 = vmatprep.subr.mxu0 0.0
      %1869 = vmatpush1.msra.mxu0 0.0
      %1870 = vmatprep.subr.mxu0 0.0
      %1871 = vmatpush1.msra.mxu0 0.0
      %1872 = vmatprep.subr.mxu0 0.0
      %1873 = vmatpush1.msra.mxu0 0.0
      %1874 = vmatprep.subr.mxu0 0.0
      %1875 = vmatpush1.msra.mxu0 0.0
      %1876 = vmatprep.subr.mxu0 0.0
      %1877 = vmatpush1.msra.mxu0 0.0
      %1878 = vmatprep.subr.mxu0 0.0
      %1879 = vmatpush1.msra.mxu0 0.0
      %1880 = vmatprep.subr.mxu0 0.0
      %1881 = vmatpush1.msra.mxu0 0.0
      %1882 = vmatprep.subr.mxu0 0.0
      %1883 = vmatpush1.msra.mxu0 0.0
      %1884 = vmatprep.mubr.f32.mxu0 0.0
      %1885 = vmatmul.mubr.f32.gmra.mrb[0].mxu0 %v1792
      %v1886 = vpop.f32.mrb[0].mxu0
      %v1887 = vadd.f32 %v1818, %v1886
      %v1888 = vpop.f32.mrb[0].mxu0
      %1889 = vdwg.mxu0
      %1890 = vst [vmem:[#allocation12] sm:$0xff] %v1887
    $region53: #{tpu_custom_call.1} parent=1 // pred_fallthru
      _
    // Predicated region
    $region54: #{tpu_custom_call.1} parent=1 // pred_check
      _
    $region55: #{tpu_custom_call.1} parent=1 // pred_check_branch
      %1892 = sbr.rel (0) target = $region57
    $region56: #{tpu_custom_call.1} parent=1 // pred_region
      %s1894 = ssub.s32 128, 128
      %1895 = vsyncadd [#allocation6], %s1894
      %s1897 = sshll.u32 [#allocation12], 4
      %s1898 = int_to_ptr.vmem [resolvable:$true] %s1897
      %1900 = dma.vmem_to_hbm [thread:$0]  %s1898, 128, %s7, [#allocation6]
    $region57: #{tpu_custom_call.1} parent=1 // pred_fallthru
      _
    // Predicated region
    $region58: #{tpu_custom_call.1} parent=1 // pred_check
      _
    $region59: #{tpu_custom_call.1} parent=1 // pred_check_branch
      %1902 = sbr.rel (0) target = $region61
    $region60: #{tpu_custom_call.1} parent=1 // pred_region
      %1903 = dma.done [#allocation6], 128
    $region61: #{tpu_custom_call.1} parent=1 // pred_fallthru
      _
    %1904 = vsyncpa [#allocation5], 1
    %1905 = vsyncpa [#allocation8], 1
    %1906 = vsyncpa [#allocation11], 1
    %1907 = vsyncpa [#allocation6], 1

</llo_original>
